<compile_context>
chip_gen: v7x
topology: tpu7x:2x2x1
jax: 0.10.0
libtpu: 0.0.40
codegen_flags: <defaults>
</compile_context>

<pallas_src>
import functools

import jax
import jax.numpy as jnp
from jax.experimental import pallas as pl
from jax.experimental.pallas import tpu as pltpu


def _layer_norm(x, w, b, eps=1e-5):
    # PyTorch nn.LayerNorm: biased variance, eps inside the sqrt.
    mu = jnp.mean(x, axis=-1, keepdims=True)
    var = jnp.mean((x - mu) ** 2, axis=-1, keepdims=True)
    return (x - mu) * jax.lax.rsqrt(var + eps) * w + b


def encoder_stack_kernel(
    # inputs
    h0_ref,
    wq_ref, bq_ref, wk_ref, bk_ref, wv_ref, bv_ref,
    wo_ref, bo_ref, ln1w_ref, ln1b_ref,
    w1_ref, b1_ref, w2_ref, b2_ref, ln2w_ref, ln2b_ref,
    # output (doubles as the activation carrier across the layer axis)
    out_ref,
    *, nhead, compute_dtype, exact_softmax):
    """One post-norm TransformerEncoderLayer per (batch_tile, layer) step."""
    l = pl.program_id(1)
    Bt, S, d_model = out_ref.shape
    head_dim = d_model // nhead
    cd = compute_dtype

    # Seed the activation carrier from the projected input on layer 0.
    @pl.when(l == 0)
    def _():
        out_ref[...] = h0_ref[...].astype(jnp.float32)

    h = out_ref[...].reshape(Bt * S, d_model)          # f32 residual stream

    def mm(a_cd, w):
        # MXU inputs in compute_dtype, accumulation in f32.
        return jnp.dot(a_cd, w, preferred_element_type=jnp.float32)

    # ---- multi-head self-attention (1/sqrt(hd) pre-folded into wq/bq) ------
    h_cd = h.astype(cd)                                # cast once, reuse 3x
    q = (mm(h_cd, wq_ref[0]) + bq_ref[0]).astype(cd).reshape(Bt, S, d_model)
    k = (mm(h_cd, wk_ref[0]) + bk_ref[0]).astype(cd).reshape(Bt, S, d_model)
    v = (mm(h_cd, wv_ref[0]) + bv_ref[0]).astype(cd).reshape(Bt, S, d_model)

    # Static unroll over heads; contexts assembled with a single full-width
    # concatenate (no masked lane-sliced scratch stores).
    # TODO(synk): for long speech sequences, tile the kv axis with an online
    # softmax (flash pattern) instead of materializing full (S, S) scores.
    heads = []
    for hh in range(nhead):
        lo, hi = hh * head_dim, (hh + 1) * head_dim
        s = jnp.einsum('bqe,bke->bqk', q[:, :, lo:hi], k[:, :, lo:hi],
                       preferred_element_type=jnp.float32)
        s = s - jnp.max(s, axis=-1, keepdims=True)
        p = jnp.exp(s)
        denom = jnp.sum(p, axis=-1, keepdims=True)
        if exact_softmax:
            p = p / denom
        else:
            p = p * pl.reciprocal(denom, approx=True)   # EUP slot, ~2^-12 rel err
        heads.append(jnp.einsum('bqk,bke->bqe', p.astype(cd), v[:, :, lo:hi],
                                preferred_element_type=jnp.float32))
    ctx = jnp.concatenate(heads, axis=-1).reshape(Bt * S, d_model)

    attn = mm(ctx.astype(cd), wo_ref[0]) + bo_ref[0]
    h = _layer_norm(h + attn, ln1w_ref[0], ln1b_ref[0])

    # ---- feed-forward (ReLU) ------------------------------------------------
    ff = jnp.maximum(mm(h.astype(cd), w1_ref[0]) + b1_ref[0], 0.0)
    ff = mm(ff.astype(cd), w2_ref[0]) + b2_ref[0]
    h = _layer_norm(h + ff, ln2w_ref[0], ln2b_ref[0])

    out_ref[...] = h.reshape(Bt, S, d_model)


def _vmem_capacity_bytes():
    try:
        info = pltpu.get_tpu_info()
        cap = getattr(info, 'vmem_capacity_bytes', None)
        if cap:
            return int(cap)
    except Exception:
        pass
    return 64 * 1024 * 1024    # conservative fallback: v7x per-TC VMEM


def speech_transformer_forward(x, params, *, nhead,
                               compute_dtype=jnp.float32,
                               batch_tiles=1,
                               ffn_buffers=2,
                               exact_softmax=False):
    """x: (B, S, input_dim); params in PyTorch layout (see init_params)."""
    B, S, F = x.shape
    d_model = params['in_proj_w'].shape[0]
    L = params['attn_in_w'].shape[0]
    ff_dim = params['ff1_w'].shape[1]
    assert d_model % nhead == 0
    assert B % batch_tiles == 0
    Bt = B // batch_tiles
    head_dim = d_model // nhead
    scale = 1.0 / float(head_dim) ** 0.5

    f32 = jnp.float32
    wdt = compute_dtype   # streamed weights stored narrow when bf16 requested

    # ---- input projection as a one-off XLA GEMM (keeps x / w_in out of the
    # ---- kernel's per-step VMEM); activation streamed in compute_dtype ------
    h0 = (x.astype(f32).reshape(B * S, F) @ params['in_proj_w'].T.astype(f32)
          + params['in_proj_b'].astype(f32)).reshape(B, S, d_model)
    h0 = h0.astype(compute_dtype)

    # ---- host-side weight prep: (in, out) layout, fused QKV split, softmax
    # ---- scale folded into wq/bq, leading layer axis for streaming ----------
    inw, inb = params['attn_in_w'], params['attn_in_b']     # (L,3d,d), (L,3d)
    wq = (jnp.transpose(inw[:, :d_model, :], (0, 2, 1)) * scale).astype(wdt)
    wk = jnp.transpose(inw[:, d_model:2 * d_model, :], (0, 2, 1)).astype(wdt)
    wv = jnp.transpose(inw[:, 2 * d_model:, :], (0, 2, 1)).astype(wdt)
    bq = (inb[:, :d_model] * scale).reshape(L, 1, d_model).astype(f32)
    bk = inb[:, d_model:2 * d_model].reshape(L, 1, d_model).astype(f32)
    bv = inb[:, 2 * d_model:].reshape(L, 1, d_model).astype(f32)
    wo = jnp.transpose(params['attn_out_w'], (0, 2, 1)).astype(wdt)
    bo = params['attn_out_b'].reshape(L, 1, d_model).astype(f32)
    ln1w = params['ln1_w'].reshape(L, 1, d_model).astype(f32)
    ln1b = params['ln1_b'].reshape(L, 1, d_model).astype(f32)
    # TODO(synk): on v7x, w1/w2 could be stored fp8 with per-channel scales to
    # halve the dominant FFN weight DMA / VMEM tile again.
    w1 = jnp.transpose(params['ff1_w'], (0, 2, 1)).astype(wdt)   # (L, d, ff)
    b1 = params['ff1_b'].reshape(L, 1, ff_dim).astype(f32)
    w2 = jnp.transpose(params['ff2_w'], (0, 2, 1)).astype(wdt)   # (L, ff, d)
    b2 = params['ff2_b'].reshape(L, 1, d_model).astype(f32)
    ln2w = params['ln2_w'].reshape(L, 1, d_model).astype(f32)
    ln2b = params['ln2_b'].reshape(L, 1, d_model).astype(f32)

    batch3 = lambda b, l: (b, 0, 0)
    layer3 = lambda b, l: (l, 0, 0)

    def wspec(shape, *, buffers=2):
        # Optional deeper buffering for the big FFN weights (v5e/v6e only, if
        # profiling shows exposed weight DMA); default 2 = standard pipeline.
        if buffers > 2:
            return pl.BlockSpec(shape, layer3, pipeline_mode=pl.Buffered(buffers))
        return pl.BlockSpec(shape, layer3)

    in_specs = [
        pl.BlockSpec((Bt, S, d_model), batch3),            # h0
        wspec((1, d_model, d_model)),                      # wq
        wspec((1, 1, d_model)),                            # bq
        wspec((1, d_model, d_model)),                      # wk
        wspec((1, 1, d_model)),                            # bk
        wspec((1, d_model, d_model)),                      # wv
        wspec((1, 1, d_model)),                            # bv
        wspec((1, d_model, d_model)),                      # wo
        wspec((1, 1, d_model)),                            # bo
        wspec((1, 1, d_model)),                            # ln1w
        wspec((1, 1, d_model)),                            # ln1b
        wspec((1, d_model, ff_dim), buffers=ffn_buffers),  # w1
        wspec((1, 1, ff_dim)),                             # b1
        wspec((1, ff_dim, d_model), buffers=ffn_buffers),  # w2
        wspec((1, 1, d_model)),                            # b2
        wspec((1, 1, d_model)),                            # ln2w
        wspec((1, 1, d_model)),                            # ln2b
    ]
    out_spec = pl.BlockSpec((Bt, S, d_model), batch3)

    # ---- VMEM budget: multi-buffer factor only on streamed weight blocks,
    # ---- residents/activations counted once, clamp to ~75% of device VMEM --
    wbytes = jnp.dtype(wdt).itemsize
    hbytes = jnp.dtype(compute_dtype).itemsize
    attn_w = 4 * d_model * d_model * wbytes + 7 * d_model * 4
    ffn_w = 2 * d_model * ff_dim * wbytes + (d_model + ff_dim) * 4
    streamed = 2 * attn_w + max(2, ffn_buffers) * ffn_w
    resident = 2 * Bt * S * d_model * hbytes + 2 * Bt * S * d_model * 4
    acts = (6 * Bt * S * d_model + Bt * S * ff_dim + Bt * S * S) * 4
    need = int(1.25 * (streamed + resident + acts))
    ceiling = int(0.75 * _vmem_capacity_bytes())
    vmem_limit = int(min(max(need, 32 * 1024 * 1024), ceiling))

    kernel = functools.partial(encoder_stack_kernel, nhead=nhead,
                               compute_dtype=compute_dtype,
                               exact_softmax=exact_softmax)
    h_final = pl.pallas_call(
        kernel,
        out_shape=jax.ShapeDtypeStruct((B, S, d_model), jnp.float32),
        grid=(batch_tiles, L),
        in_specs=in_specs,
        out_specs=out_spec,
        compiler_params=pltpu.CompilerParams(
            dimension_semantics=("parallel", "arbitrary"),
            vmem_limit_bytes=vmem_limit),
    )(h0, wq, bq, wk, bk, wv, bv, wo, bo, ln1w, ln1b,
      w1, b1, w2, b2, ln2w, ln2b)

    # ---- mean over sequence + classifier (tiny one-off GEMM) in XLA ---------
    pooled = jnp.mean(h_final, axis=1)                       # (B, d_model)
    logits = pooled @ params['cls_w'].T.astype(f32) + params['cls_b'].astype(f32)
    return logits


def reference_forward(x, params, *, nhead):
    """Pure-JAX mirror of the PyTorch module (f32), for correctness check."""
    B, S, F = x.shape
    d_model = params['in_proj_w'].shape[0]
    L = params['attn_in_w'].shape[0]
    head_dim = d_model // nhead
    scale = 1.0 / float(head_dim) ** 0.5
    h = x.reshape(B * S, F) @ params['in_proj_w'].T + params['in_proj_b']
    for l in range(L):
        qkv = h @ params['attn_in_w'][l].T + params['attn_in_b'][l]
        q = qkv[:, :d_model].reshape(B, S, d_model)
        k = qkv[:, d_model:2 * d_model].reshape(B, S, d_model)
        v = qkv[:, 2 * d_model:].reshape(B, S, d_model)
        heads = []
        for hh in range(nhead):
            lo, hi = hh * head_dim, (hh + 1) * head_dim
            s = jnp.einsum('bqe,bke->bqk', q[..., lo:hi], k[..., lo:hi]) * scale
            p = jax.nn.softmax(s, axis=-1)
            heads.append(jnp.einsum('bqk,bke->bqe', p, v[..., lo:hi]))
        ctx = jnp.concatenate(heads, axis=-1).reshape(B * S, d_model)
        attn = ctx @ params['attn_out_w'][l].T + params['attn_out_b'][l]
        h = _layer_norm(h + attn, params['ln1_w'][l], params['ln1_b'][l])
        ffv = jnp.maximum(h @ params['ff1_w'][l].T + params['ff1_b'][l], 0.0)
        ffv = ffv @ params['ff2_w'][l].T + params['ff2_b'][l]
        h = _layer_norm(h + ffv, params['ln2_w'][l], params['ln2_b'][l])
    pooled = h.reshape(B, S, d_model).mean(axis=1)
    return pooled @ params['cls_w'].T + params['cls_b']


def init_params(key, input_dim, num_classes, d_model, num_layers,
                dim_feedforward):
    """Parameters in PyTorch nn.Module layout (weight = (out, in))."""
    ks = jax.random.split(key, 12)
    rnd = lambda k, shp: 0.02 * jax.random.normal(k, shp, jnp.float32)
    return dict(
        in_proj_w=rnd(ks[0], (d_model, input_dim)),
        in_proj_b=rnd(ks[1], (d_model,)),
        attn_in_w=rnd(ks[2], (num_layers, 3 * d_model, d_model)),
        attn_in_b=rnd(ks[3], (num_layers, 3 * d_model)),
        attn_out_w=rnd(ks[4], (num_layers, d_model, d_model)),
        attn_out_b=rnd(ks[5], (num_layers, d_model)),
        ln1_w=jnp.ones((num_layers, d_model), jnp.float32),
        ln1_b=jnp.zeros((num_layers, d_model), jnp.float32),
        ff1_w=rnd(ks[6], (num_layers, dim_feedforward, d_model)),
        ff1_b=rnd(ks[7], (num_layers, dim_feedforward)),
        ff2_w=rnd(ks[8], (num_layers, d_model, dim_feedforward)),
        ff2_b=rnd(ks[9], (num_layers, d_model)),
        ln2_w=jnp.ones((num_layers, d_model), jnp.float32),
        ln2_b=jnp.zeros((num_layers, d_model), jnp.float32),
        cls_w=rnd(ks[10], (num_classes, d_model)),
        cls_b=rnd(ks[11], (num_classes,)),
    )


if __name__ == "__main__":
    # Small shapes consistent with the module's forward.
    batch, seq, input_dim = 2, 8, 16
    num_classes, d_model, nhead = 10, 32, 4
    num_layers, dim_feedforward = 2, 64
    # TODO(synk): dropout layers are treated as identity (eval-mode forward).

    key = jax.random.PRNGKey(0)
    kx, kp = jax.random.split(key)
    x = jax.random.normal(kx, (batch, seq, input_dim), jnp.float32)
    params = init_params(kp, input_dim, num_classes, d_model, num_layers,
                         dim_feedforward)

    # f32 compute for the exact-semantics correctness check.  On real configs:
    # compute_dtype=jnp.bfloat16 (all generations; accumulation stays f32),
    # batch_tiles=2 on v7x to use both TensorCores, ffn_buffers=3 on v5e/v6e
    # if weight DMA is exposed.
    logits = speech_transformer_forward(x, params, nhead=nhead,
                                        compute_dtype=jnp.float32,
                                        batch_tiles=2)
    logits = jax.block_until_ready(logits)

    ref = reference_forward(x, params, nhead=nhead)
    assert logits.shape == (batch, num_classes)
    err = float(jnp.max(jnp.abs(logits - ref)))
    # Tolerance covers pl.reciprocal(approx=True) in the softmax (~2^-12 rel);
    # pass exact_softmax=True for strict parity.
    assert jnp.allclose(logits, ref, rtol=2e-3, atol=2e-3), err
    print("KERNEL_OK")
</pallas_src>

<mosaic_0001>
module attributes {stable_mosaic.version = 11 : i64} {
  func.func @encoder_stack_kernel(%arg0: i32, %arg1: i32, %arg2: memref<1x8x32xf32, #tpu.memory_space<vmem>>, %arg3: memref<1x32x32xf32, #tpu.memory_space<vmem>>, %arg4: memref<1x1x32xf32, #tpu.memory_space<vmem>>, %arg5: memref<1x32x32xf32, #tpu.memory_space<vmem>>, %arg6: memref<1x1x32xf32, #tpu.memory_space<vmem>>, %arg7: memref<1x32x32xf32, #tpu.memory_space<vmem>>, %arg8: memref<1x1x32xf32, #tpu.memory_space<vmem>>, %arg9: memref<1x32x32xf32, #tpu.memory_space<vmem>>, %arg10: memref<1x1x32xf32, #tpu.memory_space<vmem>>, %arg11: memref<1x1x32xf32, #tpu.memory_space<vmem>>, %arg12: memref<1x1x32xf32, #tpu.memory_space<vmem>>, %arg13: memref<1x32x64xf32, #tpu.memory_space<vmem>>, %arg14: memref<1x1x64xf32, #tpu.memory_space<vmem>>, %arg15: memref<1x64x32xf32, #tpu.memory_space<vmem>>, %arg16: memref<1x1x32xf32, #tpu.memory_space<vmem>>, %arg17: memref<1x1x32xf32, #tpu.memory_space<vmem>>, %arg18: memref<1x1x32xf32, #tpu.memory_space<vmem>>, %arg19: memref<1x8x32xf32, #tpu.memory_space<vmem>>) attributes {dimension_semantics = [#tpu.dimension_semantics<parallel>, #tpu.dimension_semantics<arbitrary>], iteration_bounds = array<i64: 2, 2>, scalar_prefetch = 0 : i64, scratch_operands = 0 : i64, tpu.core_type = #tpu.core_type<tc>, window_params = [{transform_indices = @transform_0, window_bounds = array<i64: 1, 8, 32>}, {transform_indices = @transform_1, window_bounds = array<i64: 1, 32, 32>}, {transform_indices = @transform_2, window_bounds = array<i64: 1, 1, 32>}, {transform_indices = @transform_3, window_bounds = array<i64: 1, 32, 32>}, {transform_indices = @transform_4, window_bounds = array<i64: 1, 1, 32>}, {transform_indices = @transform_5, window_bounds = array<i64: 1, 32, 32>}, {transform_indices = @transform_6, window_bounds = array<i64: 1, 1, 32>}, {transform_indices = @transform_7, window_bounds = array<i64: 1, 32, 32>}, {transform_indices = @transform_8, window_bounds = array<i64: 1, 1, 32>}, {transform_indices = @transform_9, window_bounds = array<i64: 1, 1, 32>}, {transform_indices = @transform_10, window_bounds = array<i64: 1, 1, 32>}, {transform_indices = @transform_11, window_bounds = array<i64: 1, 32, 64>}, {transform_indices = @transform_12, window_bounds = array<i64: 1, 1, 64>}, {transform_indices = @transform_13, window_bounds = array<i64: 1, 64, 32>}, {transform_indices = @transform_14, window_bounds = array<i64: 1, 1, 32>}, {transform_indices = @transform_15, window_bounds = array<i64: 1, 1, 32>}, {transform_indices = @transform_16, window_bounds = array<i64: 1, 1, 32>}, {transform_indices = @transform_17, window_bounds = array<i64: 1, 8, 32>}]} {
    %c0_i32 = arith.constant 0 : i32
    %0 = arith.cmpi eq, %arg1, %c0_i32 : i32
    %1 = arith.extui %0 : i1 to i32
    %c0_i32_0 = arith.constant 0 : i32
    %2 = arith.cmpi ne, %1, %c0_i32_0 : i32
    scf.if %2 {
      %c0_86 = arith.constant 0 : index
      %c0_87 = arith.constant 0 : index
      %c0_88 = arith.constant 0 : index
      %170 = vector.load %arg2[%c0_86, %c0_87, %c0_88] : memref<1x8x32xf32, #tpu.memory_space<vmem>>, vector<1x8x32xf32>
      %c0_89 = arith.constant 0 : index
      %c0_90 = arith.constant 0 : index
      %c0_91 = arith.constant 0 : index
      %171 = vector.load %arg19[%c0_89, %c0_90, %c0_91] : memref<1x8x32xf32, #tpu.memory_space<vmem>>, vector<1x8x32xf32>
      tpu.vector_store %arg19[%c0_89, %c0_90, %c0_91], %170 {strides = array<i32>} : memref<1x8x32xf32, #tpu.memory_space<vmem>>, vector<1x8x32xf32>,
    } else {
    }
    %c0 = arith.constant 0 : index
    %c0_1 = arith.constant 0 : index
    %c0_2 = arith.constant 0 : index
    %3 = vector.load %arg19[%c0, %c0_1, %c0_2] : memref<1x8x32xf32, #tpu.memory_space<vmem>>, vector<1x8x32xf32>
    %4 = vector.shape_cast %3 : vector<1x8x32xf32> to vector<8x32xf32>
    %c0_3 = arith.constant 0 : index
    %c0_4 = arith.constant 0 : index
    %c0_5 = arith.constant 0 : index
    %5 = vector.load %arg3[%c0_3, %c0_4, %c0_5] : memref<1x32x32xf32, #tpu.memory_space<vmem>>, vector<1x32x32xf32>
    %6 = vector.shape_cast %5 : vector<1x32x32xf32> to vector<32x32xf32>
    %cst = arith.constant dense<0.000000e+00> : vector<8x32xf32>
    %7 = tpu.matmul %4, %6, %cst {dimension_numbers = #tpu.dot_dimension_numbers<[1], [0], [0], [1], [0, 0, 1, 1], [], []>} : vector<8x32xf32>, vector<32x32xf32>, vector<8x32xf32> -> vector<8x32xf32>
    %c0_6 = arith.constant 0 : index
    %c0_7 = arith.constant 0 : index
    %c0_8 = arith.constant 0 : index
    %8 = vector.load %arg4[%c0_6, %c0_7, %c0_8] : memref<1x1x32xf32, #tpu.memory_space<vmem>>, vector<1x1x32xf32>
    %9 = vector.shape_cast %8 : vector<1x1x32xf32> to vector<1x32xf32>
    %10 = vector.broadcast %9 : vector<1x32xf32> to vector<8x32xf32>
    %11 = arith.addf %7, %10 : vector<8x32xf32>
    %12 = vector.shape_cast %11 : vector<8x32xf32> to vector<1x8x32xf32>
    %c0_9 = arith.constant 0 : index
    %c0_10 = arith.constant 0 : index
    %c0_11 = arith.constant 0 : index
    %13 = vector.load %arg5[%c0_9, %c0_10, %c0_11] : memref<1x32x32xf32, #tpu.memory_space<vmem>>, vector<1x32x32xf32>
    %14 = vector.shape_cast %13 : vector<1x32x32xf32> to vector<32x32xf32>
    %cst_12 = arith.constant dense<0.000000e+00> : vector<8x32xf32>
    %15 = tpu.matmul %4, %14, %cst_12 {dimension_numbers = #tpu.dot_dimension_numbers<[1], [0], [0], [1], [0, 0, 1, 1], [], []>} : vector<8x32xf32>, vector<32x32xf32>, vector<8x32xf32> -> vector<8x32xf32>
    %c0_13 = arith.constant 0 : index
    %c0_14 = arith.constant 0 : index
    %c0_15 = arith.constant 0 : index
    %16 = vector.load %arg6[%c0_13, %c0_14, %c0_15] : memref<1x1x32xf32, #tpu.memory_space<vmem>>, vector<1x1x32xf32>
    %17 = vector.shape_cast %16 : vector<1x1x32xf32> to vector<1x32xf32>
    %18 = vector.broadcast %17 : vector<1x32xf32> to vector<8x32xf32>
    %19 = arith.addf %15, %18 : vector<8x32xf32>
    %20 = vector.shape_cast %19 : vector<8x32xf32> to vector<1x8x32xf32>
    %c0_16 = arith.constant 0 : index
    %c0_17 = arith.constant 0 : index
    %c0_18 = arith.constant 0 : index
    %21 = vector.load %arg7[%c0_16, %c0_17, %c0_18] : memref<1x32x32xf32, #tpu.memory_space<vmem>>, vector<1x32x32xf32>
    %22 = vector.shape_cast %21 : vector<1x32x32xf32> to vector<32x32xf32>
    %cst_19 = arith.constant dense<0.000000e+00> : vector<8x32xf32>
    %23 = tpu.matmul %4, %22, %cst_19 {dimension_numbers = #tpu.dot_dimension_numbers<[1], [0], [0], [1], [0, 0, 1, 1], [], []>} : vector<8x32xf32>, vector<32x32xf32>, vector<8x32xf32> -> vector<8x32xf32>
    %c0_20 = arith.constant 0 : index
    %c0_21 = arith.constant 0 : index
    %c0_22 = arith.constant 0 : index
    %24 = vector.load %arg8[%c0_20, %c0_21, %c0_22] : memref<1x1x32xf32, #tpu.memory_space<vmem>>, vector<1x1x32xf32>
    %25 = vector.shape_cast %24 : vector<1x1x32xf32> to vector<1x32xf32>
    %26 = vector.broadcast %25 : vector<1x32xf32> to vector<8x32xf32>
    %27 = arith.addf %23, %26 : vector<8x32xf32>
    %28 = vector.shape_cast %27 : vector<8x32xf32> to vector<1x8x32xf32>
    %29 = vector.extract_strided_slice %12 {offsets = [0, 0, 0], sizes = [1, 8, 8], strides = [1, 1, 1]} : vector<1x8x32xf32> to vector<1x8x8xf32>
    %30 = vector.extract_strided_slice %20 {offsets = [0, 0, 0], sizes = [1, 8, 8], strides = [1, 1, 1]} : vector<1x8x32xf32> to vector<1x8x8xf32>
    "tpu.trace_start"() <{level = 10 : i32, message = "bqe,bke->bqk"}> : () -> ()
    %cst_23 = arith.constant dense<0.000000e+00> : vector<1x8x8xf32>
    %31 = tpu.matmul %29, %30, %cst_23 {dimension_numbers = #tpu.dot_dimension_numbers<[2], [2], [1], [1], [0, 0, 0, 1, 1, 1], [0], [0]>} : vector<1x8x8xf32>, vector<1x8x8xf32>, vector<1x8x8xf32> -> vector<1x8x8xf32>
    "tpu.trace_stop"() : () -> ()
    %cst_24 = arith.constant dense<0xFF800000> : vector<1x8xf32>
    %32 = vector.multi_reduction <maximumf>, %31, %cst_24 [2] : vector<1x8x8xf32> to vector<1x8xf32>
    %33 = vector.shape_cast %32 : vector<1x8xf32> to vector<1x8x1xf32>
    %34 = vector.broadcast %33 : vector<1x8x1xf32> to vector<1x8x8xf32>
    %35 = arith.subf %31, %34 : vector<1x8x8xf32>
    %36 = math.exp %35 : vector<1x8x8xf32>
    %cst_25 = arith.constant dense<0.000000e+00> : vector<1x8xf32>
    %37 = vector.multi_reduction <add>, %36, %cst_25 [2] : vector<1x8x8xf32> to vector<1x8xf32>
    %38 = vector.shape_cast %37 : vector<1x8xf32> to vector<1x8x1xf32>
    %39 = tpu.reciprocal %38 {approx = true} : vector<1x8x1xf32> -> vector<1x8x1xf32>
    %40 = vector.broadcast %39 : vector<1x8x1xf32> to vector<1x8x8xf32>
    %41 = arith.mulf %36, %40 : vector<1x8x8xf32>
    %42 = vector.extract_strided_slice %28 {offsets = [0, 0, 0], sizes = [1, 8, 8], strides = [1, 1, 1]} : vector<1x8x32xf32> to vector<1x8x8xf32>
    "tpu.trace_start"() <{level = 10 : i32, message = "bqk,bke->bqe"}> : () -> ()
    %cst_26 = arith.constant dense<0.000000e+00> : vector<1x8x8xf32>
    %43 = tpu.matmul %41, %42, %cst_26 {dimension_numbers = #tpu.dot_dimension_numbers<[2], [1], [1], [2], [0, 0, 0, 1, 1, 2], [0], [0]>} : vector<1x8x8xf32>, vector<1x8x8xf32>, vector<1x8x8xf32> -> vector<1x8x8xf32>
    "tpu.trace_stop"() : () -> ()
    %44 = vector.extract_strided_slice %12 {offsets = [0, 0, 8], sizes = [1, 8, 8], strides = [1, 1, 1]} : vector<1x8x32xf32> to vector<1x8x8xf32>
    %45 = vector.extract_strided_slice %20 {offsets = [0, 0, 8], sizes = [1, 8, 8], strides = [1, 1, 1]} : vector<1x8x32xf32> to vector<1x8x8xf32>
    "tpu.trace_start"() <{level = 10 : i32, message = "bqe,bke->bqk"}> : () -> ()
    %cst_27 = arith.constant dense<0.000000e+00> : vector<1x8x8xf32>
    %46 = tpu.matmul %44, %45, %cst_27 {dimension_numbers = #tpu.dot_dimension_numbers<[2], [2], [1], [1], [0, 0, 0, 1, 1, 1], [0], [0]>} : vector<1x8x8xf32>, vector<1x8x8xf32>, vector<1x8x8xf32> -> vector<1x8x8xf32>
    "tpu.trace_stop"() : () -> ()
    %cst_28 = arith.constant dense<0xFF800000> : vector<1x8xf32>
    %47 = vector.multi_reduction <maximumf>, %46, %cst_28 [2] : vector<1x8x8xf32> to vector<1x8xf32>
    %48 = vector.shape_cast %47 : vector<1x8xf32> to vector<1x8x1xf32>
    %49 = vector.broadcast %48 : vector<1x8x1xf32> to vector<1x8x8xf32>
    %50 = arith.subf %46, %49 : vector<1x8x8xf32>
    %51 = math.exp %50 : vector<1x8x8xf32>
    %cst_29 = arith.constant dense<0.000000e+00> : vector<1x8xf32>
    %52 = vector.multi_reduction <add>, %51, %cst_29 [2] : vector<1x8x8xf32> to vector<1x8xf32>
    %53 = vector.shape_cast %52 : vector<1x8xf32> to vector<1x8x1xf32>
    %54 = tpu.reciprocal %53 {approx = true} : vector<1x8x1xf32> -> vector<1x8x1xf32>
    %55 = vector.broadcast %54 : vector<1x8x1xf32> to vector<1x8x8xf32>
    %56 = arith.mulf %51, %55 : vector<1x8x8xf32>
    %57 = vector.extract_strided_slice %28 {offsets = [0, 0, 8], sizes = [1, 8, 8], strides = [1, 1, 1]} : vector<1x8x32xf32> to vector<1x8x8xf32>
    "tpu.trace_start"() <{level = 10 : i32, message = "bqk,bke->bqe"}> : () -> ()
    %cst_30 = arith.constant dense<0.000000e+00> : vector<1x8x8xf32>
    %58 = tpu.matmul %56, %57, %cst_30 {dimension_numbers = #tpu.dot_dimension_numbers<[2], [1], [1], [2], [0, 0, 0, 1, 1, 2], [0], [0]>} : vector<1x8x8xf32>, vector<1x8x8xf32>, vector<1x8x8xf32> -> vector<1x8x8xf32>
    "tpu.trace_stop"() : () -> ()
    %59 = vector.extract_strided_slice %12 {offsets = [0, 0, 16], sizes = [1, 8, 8], strides = [1, 1, 1]} : vector<1x8x32xf32> to vector<1x8x8xf32>
    %60 = vector.extract_strided_slice %20 {offsets = [0, 0, 16], sizes = [1, 8, 8], strides = [1, 1, 1]} : vector<1x8x32xf32> to vector<1x8x8xf32>
    "tpu.trace_start"() <{level = 10 : i32, message = "bqe,bke->bqk"}> : () -> ()
    %cst_31 = arith.constant dense<0.000000e+00> : vector<1x8x8xf32>
    %61 = tpu.matmul %59, %60, %cst_31 {dimension_numbers = #tpu.dot_dimension_numbers<[2], [2], [1], [1], [0, 0, 0, 1, 1, 1], [0], [0]>} : vector<1x8x8xf32>, vector<1x8x8xf32>, vector<1x8x8xf32> -> vector<1x8x8xf32>
    "tpu.trace_stop"() : () -> ()
    %cst_32 = arith.constant dense<0xFF800000> : vector<1x8xf32>
    %62 = vector.multi_reduction <maximumf>, %61, %cst_32 [2] : vector<1x8x8xf32> to vector<1x8xf32>
    %63 = vector.shape_cast %62 : vector<1x8xf32> to vector<1x8x1xf32>
    %64 = vector.broadcast %63 : vector<1x8x1xf32> to vector<1x8x8xf32>
    %65 = arith.subf %61, %64 : vector<1x8x8xf32>
    %66 = math.exp %65 : vector<1x8x8xf32>
    %cst_33 = arith.constant dense<0.000000e+00> : vector<1x8xf32>
    %67 = vector.multi_reduction <add>, %66, %cst_33 [2] : vector<1x8x8xf32> to vector<1x8xf32>
    %68 = vector.shape_cast %67 : vector<1x8xf32> to vector<1x8x1xf32>
    %69 = tpu.reciprocal %68 {approx = true} : vector<1x8x1xf32> -> vector<1x8x1xf32>
    %70 = vector.broadcast %69 : vector<1x8x1xf32> to vector<1x8x8xf32>
    %71 = arith.mulf %66, %70 : vector<1x8x8xf32>
    %72 = vector.extract_strided_slice %28 {offsets = [0, 0, 16], sizes = [1, 8, 8], strides = [1, 1, 1]} : vector<1x8x32xf32> to vector<1x8x8xf32>
    "tpu.trace_start"() <{level = 10 : i32, message = "bqk,bke->bqe"}> : () -> ()
    %cst_34 = arith.constant dense<0.000000e+00> : vector<1x8x8xf32>
    %73 = tpu.matmul %71, %72, %cst_34 {dimension_numbers = #tpu.dot_dimension_numbers<[2], [1], [1], [2], [0, 0, 0, 1, 1, 2], [0], [0]>} : vector<1x8x8xf32>, vector<1x8x8xf32>, vector<1x8x8xf32> -> vector<1x8x8xf32>
    "tpu.trace_stop"() : () -> ()
    %74 = vector.extract_strided_slice %12 {offsets = [0, 0, 24], sizes = [1, 8, 8], strides = [1, 1, 1]} : vector<1x8x32xf32> to vector<1x8x8xf32>
    %75 = vector.extract_strided_slice %20 {offsets = [0, 0, 24], sizes = [1, 8, 8], strides = [1, 1, 1]} : vector<1x8x32xf32> to vector<1x8x8xf32>
    "tpu.trace_start"() <{level = 10 : i32, message = "bqe,bke->bqk"}> : () -> ()
    %cst_35 = arith.constant dense<0.000000e+00> : vector<1x8x8xf32>
    %76 = tpu.matmul %74, %75, %cst_35 {dimension_numbers = #tpu.dot_dimension_numbers<[2], [2], [1], [1], [0, 0, 0, 1, 1, 1], [0], [0]>} : vector<1x8x8xf32>, vector<1x8x8xf32>, vector<1x8x8xf32> -> vector<1x8x8xf32>
    "tpu.trace_stop"() : () -> ()
    %cst_36 = arith.constant dense<0xFF800000> : vector<1x8xf32>
    %77 = vector.multi_reduction <maximumf>, %76, %cst_36 [2] : vector<1x8x8xf32> to vector<1x8xf32>
    %78 = vector.shape_cast %77 : vector<1x8xf32> to vector<1x8x1xf32>
    %79 = vector.broadcast %78 : vector<1x8x1xf32> to vector<1x8x8xf32>
    %80 = arith.subf %76, %79 : vector<1x8x8xf32>
    %81 = math.exp %80 : vector<1x8x8xf32>
    %cst_37 = arith.constant dense<0.000000e+00> : vector<1x8xf32>
    %82 = vector.multi_reduction <add>, %81, %cst_37 [2] : vector<1x8x8xf32> to vector<1x8xf32>
    %83 = vector.shape_cast %82 : vector<1x8xf32> to vector<1x8x1xf32>
    %84 = tpu.reciprocal %83 {approx = true} : vector<1x8x1xf32> -> vector<1x8x1xf32>
    %85 = vector.broadcast %84 : vector<1x8x1xf32> to vector<1x8x8xf32>
    %86 = arith.mulf %81, %85 : vector<1x8x8xf32>
    %87 = vector.extract_strided_slice %28 {offsets = [0, 0, 24], sizes = [1, 8, 8], strides = [1, 1, 1]} : vector<1x8x32xf32> to vector<1x8x8xf32>
    "tpu.trace_start"() <{level = 10 : i32, message = "bqk,bke->bqe"}> : () -> ()
    %cst_38 = arith.constant dense<0.000000e+00> : vector<1x8x8xf32>
    %88 = tpu.matmul %86, %87, %cst_38 {dimension_numbers = #tpu.dot_dimension_numbers<[2], [1], [1], [2], [0, 0, 0, 1, 1, 2], [0], [0]>} : vector<1x8x8xf32>, vector<1x8x8xf32>, vector<1x8x8xf32> -> vector<1x8x8xf32>
    "tpu.trace_stop"() : () -> ()
    %89 = tpu.concatenate %43, %58, %73, %88 in 2 : vector<1x8x8xf32>, vector<1x8x8xf32>, vector<1x8x8xf32>, vector<1x8x8xf32> -> vector<1x8x32xf32>
    %90 = vector.shape_cast %89 : vector<1x8x32xf32> to vector<8x32xf32>
    %c0_39 = arith.constant 0 : index
    %c0_40 = arith.constant 0 : index
    %c0_41 = arith.constant 0 : index
    %91 = vector.load %arg9[%c0_39, %c0_40, %c0_41] : memref<1x32x32xf32, #tpu.memory_space<vmem>>, vector<1x32x32xf32>
    %92 = vector.shape_cast %91 : vector<1x32x32xf32> to vector<32x32xf32>
    %cst_42 = arith.constant dense<0.000000e+00> : vector<8x32xf32>
    %93 = tpu.matmul %90, %92, %cst_42 {dimension_numbers = #tpu.dot_dimension_numbers<[1], [0], [0], [1], [0, 0, 1, 1], [], []>} : vector<8x32xf32>, vector<32x32xf32>, vector<8x32xf32> -> vector<8x32xf32>
    %c0_43 = arith.constant 0 : index
    %c0_44 = arith.constant 0 : index
    %c0_45 = arith.constant 0 : index
    %94 = vector.load %arg10[%c0_43, %c0_44, %c0_45] : memref<1x1x32xf32, #tpu.memory_space<vmem>>, vector<1x1x32xf32>
    %95 = vector.shape_cast %94 : vector<1x1x32xf32> to vector<1x32xf32>
    %96 = vector.broadcast %95 : vector<1x32xf32> to vector<8x32xf32>
    %97 = arith.addf %93, %96 : vector<8x32xf32>
    %98 = arith.addf %4, %97 : vector<8x32xf32>
    %c0_46 = arith.constant 0 : index
    %c0_47 = arith.constant 0 : index
    %c0_48 = arith.constant 0 : index
    %99 = vector.load %arg11[%c0_46, %c0_47, %c0_48] : memref<1x1x32xf32, #tpu.memory_space<vmem>>, vector<1x1x32xf32>
    %100 = vector.shape_cast %99 : vector<1x1x32xf32> to vector<1x32xf32>
    %c0_49 = arith.constant 0 : index
    %c0_50 = arith.constant 0 : index
    %c0_51 = arith.constant 0 : index
    %101 = vector.load %arg12[%c0_49, %c0_50, %c0_51] : memref<1x1x32xf32, #tpu.memory_space<vmem>>, vector<1x1x32xf32>
    %102 = vector.shape_cast %101 : vector<1x1x32xf32> to vector<1x32xf32>
    %cst_52 = arith.constant dense<0.000000e+00> : vector<8xf32>
    %103 = vector.multi_reduction <add>, %98, %cst_52 [1] : vector<8x32xf32> to vector<8xf32>
    %104 = vector.shape_cast %103 : vector<8xf32> to vector<8x1xf32>
    %cst_53 = arith.constant 3.200000e+01 : f32
    %105 = vector.broadcast %cst_53 : f32 to vector<8x1xf32>
    %106 = arith.divf %104, %105 : vector<8x1xf32>
    %107 = vector.broadcast %106 : vector<8x1xf32> to vector<8x32xf32>
    %108 = arith.subf %98, %107 : vector<8x32xf32>
    %109 = arith.mulf %108, %108 : vector<8x32xf32>
    %cst_54 = arith.constant dense<0.000000e+00> : vector<8xf32>
    %110 = vector.multi_reduction <add>, %109, %cst_54 [1] : vector<8x32xf32> to vector<8xf32>
    %111 = vector.shape_cast %110 : vector<8xf32> to vector<8x1xf32>
    %cst_55 = arith.constant 3.200000e+01 : f32
    %112 = vector.broadcast %cst_55 : f32 to vector<8x1xf32>
    %113 = arith.divf %111, %112 : vector<8x1xf32>
    %114 = vector.broadcast %106 : vector<8x1xf32> to vector<8x32xf32>
    %115 = arith.subf %98, %114 : vector<8x32xf32>
    %cst_56 = arith.constant 9.99999974E-6 : f32
    %116 = vector.broadcast %cst_56 : f32 to vector<8x1xf32>
    %117 = arith.addf %113, %116 : vector<8x1xf32>
    %118 = math.rsqrt %117 : vector<8x1xf32>
    %119 = vector.broadcast %118 : vector<8x1xf32> to vector<8x32xf32>
    %120 = arith.mulf %115, %119 : vector<8x32xf32>
    %121 = vector.broadcast %100 : vector<1x32xf32> to vector<8x32xf32>
    %122 = arith.mulf %120, %121 : vector<8x32xf32>
    %123 = vector.broadcast %102 : vector<1x32xf32> to vector<8x32xf32>
    %124 = arith.addf %122, %123 : vector<8x32xf32>
    %c0_57 = arith.constant 0 : index
    %c0_58 = arith.constant 0 : index
    %c0_59 = arith.constant 0 : index
    %125 = vector.load %arg13[%c0_57, %c0_58, %c0_59] : memref<1x32x64xf32, #tpu.memory_space<vmem>>, vector<1x32x64xf32>
    %126 = vector.shape_cast %125 : vector<1x32x64xf32> to vector<32x64xf32>
    %cst_60 = arith.constant dense<0.000000e+00> : vector<8x64xf32>
    %127 = tpu.matmul %124, %126, %cst_60 {dimension_numbers = #tpu.dot_dimension_numbers<[1], [0], [0], [1], [0, 0, 1, 1], [], []>} : vector<8x32xf32>, vector<32x64xf32>, vector<8x64xf32> -> vector<8x64xf32>
    %c0_61 = arith.constant 0 : index
    %c0_62 = arith.constant 0 : index
    %c0_63 = arith.constant 0 : index
    %128 = vector.load %arg14[%c0_61, %c0_62, %c0_63] : memref<1x1x64xf32, #tpu.memory_space<vmem>>, vector<1x1x64xf32>
    %129 = vector.shape_cast %128 : vector<1x1x64xf32> to vector<1x64xf32>
    %130 = vector.broadcast %129 : vector<1x64xf32> to vector<8x64xf32>
    %131 = arith.addf %127, %130 : vector<8x64xf32>
    %cst_64 = arith.constant 0.000000e+00 : f32
    %132 = vector.broadcast %cst_64 : f32 to vector<8x64xf32>
    %133 = arith.maximumf %131, %132 : vector<8x64xf32>
    %c0_65 = arith.constant 0 : index
    %c0_66 = arith.constant 0 : index
    %c0_67 = arith.constant 0 : index
    %134 = vector.load %arg15[%c0_65, %c0_66, %c0_67] : memref<1x64x32xf32, #tpu.memory_space<vmem>>, vector<1x64x32xf32>
    %135 = vector.shape_cast %134 : vector<1x64x32xf32> to vector<64x32xf32>
    %cst_68 = arith.constant dense<0.000000e+00> : vector<8x32xf32>
    %136 = tpu.matmul %133, %135, %cst_68 {dimension_numbers = #tpu.dot_dimension_numbers<[1], [0], [0], [1], [0, 0, 1, 1], [], []>} : vector<8x64xf32>, vector<64x32xf32>, vector<8x32xf32> -> vector<8x32xf32>
    %c0_69 = arith.constant 0 : index
    %c0_70 = arith.constant 0 : index
    %c0_71 = arith.constant 0 : index
    %137 = vector.load %arg16[%c0_69, %c0_70, %c0_71] : memref<1x1x32xf32, #tpu.memory_space<vmem>>, vector<1x1x32xf32>
    %138 = vector.shape_cast %137 : vector<1x1x32xf32> to vector<1x32xf32>
    %139 = vector.broadcast %138 : vector<1x32xf32> to vector<8x32xf32>
    %140 = arith.addf %136, %139 : vector<8x32xf32>
    %141 = arith.addf %124, %140 : vector<8x32xf32>
    %c0_72 = arith.constant 0 : index
    %c0_73 = arith.constant 0 : index
    %c0_74 = arith.constant 0 : index
    %142 = vector.load %arg17[%c0_72, %c0_73, %c0_74] : memref<1x1x32xf32, #tpu.memory_space<vmem>>, vector<1x1x32xf32>
    %143 = vector.shape_cast %142 : vector<1x1x32xf32> to vector<1x32xf32>
    %c0_75 = arith.constant 0 : index
    %c0_76 = arith.constant 0 : index
    %c0_77 = arith.constant 0 : index
    %144 = vector.load %arg18[%c0_75, %c0_76, %c0_77] : memref<1x1x32xf32, #tpu.memory_space<vmem>>, vector<1x1x32xf32>
    %145 = vector.shape_cast %144 : vector<1x1x32xf32> to vector<1x32xf32>
    %cst_78 = arith.constant dense<0.000000e+00> : vector<8xf32>
    %146 = vector.multi_reduction <add>, %141, %cst_78 [1] : vector<8x32xf32> to vector<8xf32>
    %147 = vector.shape_cast %146 : vector<8xf32> to vector<8x1xf32>
    %cst_79 = arith.constant 3.200000e+01 : f32
    %148 = vector.broadcast %cst_79 : f32 to vector<8x1xf32>
    %149 = arith.divf %147, %148 : vector<8x1xf32>
    %150 = vector.broadcast %149 : vector<8x1xf32> to vector<8x32xf32>
    %151 = arith.subf %141, %150 : vector<8x32xf32>
    %152 = arith.mulf %151, %151 : vector<8x32xf32>
    %cst_80 = arith.constant dense<0.000000e+00> : vector<8xf32>
    %153 = vector.multi_reduction <add>, %152, %cst_80 [1] : vector<8x32xf32> to vector<8xf32>
    %154 = vector.shape_cast %153 : vector<8xf32> to vector<8x1xf32>
    %cst_81 = arith.constant 3.200000e+01 : f32
    %155 = vector.broadcast %cst_81 : f32 to vector<8x1xf32>
    %156 = arith.divf %154, %155 : vector<8x1xf32>
    %157 = vector.broadcast %149 : vector<8x1xf32> to vector<8x32xf32>
    %158 = arith.subf %141, %157 : vector<8x32xf32>
    %cst_82 = arith.constant 9.99999974E-6 : f32
    %159 = vector.broadcast %cst_82 : f32 to vector<8x1xf32>
    %160 = arith.addf %156, %159 : vector<8x1xf32>
    %161 = math.rsqrt %160 : vector<8x1xf32>
    %162 = vector.broadcast %161 : vector<8x1xf32> to vector<8x32xf32>
    %163 = arith.mulf %158, %162 : vector<8x32xf32>
    %164 = vector.broadcast %143 : vector<1x32xf32> to vector<8x32xf32>
    %165 = arith.mulf %163, %164 : vector<8x32xf32>
    %166 = vector.broadcast %145 : vector<1x32xf32> to vector<8x32xf32>
    %167 = arith.addf %165, %166 : vector<8x32xf32>
    %168 = vector.shape_cast %167 : vector<8x32xf32> to vector<1x8x32xf32>
    %c0_83 = arith.constant 0 : index
    %c0_84 = arith.constant 0 : index
    %c0_85 = arith.constant 0 : index
    %169 = vector.load %arg19[%c0_83, %c0_84, %c0_85] : memref<1x8x32xf32, #tpu.memory_space<vmem>>, vector<1x8x32xf32>
    tpu.vector_store %arg19[%c0_83, %c0_84, %c0_85], %168 {strides = array<i32>} : memref<1x8x32xf32, #tpu.memory_space<vmem>>, vector<1x8x32xf32>,
    return
  }
  func.func @transform_0(%arg0: i32, %arg1: i32) -> (i32, i32, i32) {
    %c0_i32 = arith.constant 0 : i32
    %c0_i32_0 = arith.constant 0 : i32
    %c0_i32_1 = arith.constant 0 : i32
    return %arg0, %c0_i32, %c0_i32_0 : i32, i32, i32
  }
  func.func @transform_1(%arg0: i32, %arg1: i32) -> (i32, i32, i32) {
    %c0_i32 = arith.constant 0 : i32
    %c0_i32_0 = arith.constant 0 : i32
    %c0_i32_1 = arith.constant 0 : i32
    return %arg1, %c0_i32, %c0_i32_0 : i32, i32, i32
  }
  func.func @transform_2(%arg0: i32, %arg1: i32) -> (i32, i32, i32) {
    %c0_i32 = arith.constant 0 : i32
    %c0_i32_0 = arith.constant 0 : i32
    %c0_i32_1 = arith.constant 0 : i32
    return %arg1, %c0_i32, %c0_i32_0 : i32, i32, i32
  }
  func.func @transform_3(%arg0: i32, %arg1: i32) -> (i32, i32, i32) {
    %c0_i32 = arith.constant 0 : i32
    %c0_i32_0 = arith.constant 0 : i32
    %c0_i32_1 = arith.constant 0 : i32
    return %arg1, %c0_i32, %c0_i32_0 : i32, i32, i32
  }
  func.func @transform_4(%arg0: i32, %arg1: i32) -> (i32, i32, i32) {
    %c0_i32 = arith.constant 0 : i32
    %c0_i32_0 = arith.constant 0 : i32
    %c0_i32_1 = arith.constant 0 : i32
    return %arg1, %c0_i32, %c0_i32_0 : i32, i32, i32
  }
  func.func @transform_5(%arg0: i32, %arg1: i32) -> (i32, i32, i32) {
    %c0_i32 = arith.constant 0 : i32
    %c0_i32_0 = arith.constant 0 : i32
    %c0_i32_1 = arith.constant 0 : i32
    return %arg1, %c0_i32, %c0_i32_0 : i32, i32, i32
  }
  func.func @transform_6(%arg0: i32, %arg1: i32) -> (i32, i32, i32) {
    %c0_i32 = arith.constant 0 : i32
    %c0_i32_0 = arith.constant 0 : i32
    %c0_i32_1 = arith.constant 0 : i32
    return %arg1, %c0_i32, %c0_i32_0 : i32, i32, i32
  }
  func.func @transform_7(%arg0: i32, %arg1: i32) -> (i32, i32, i32) {
    %c0_i32 = arith.constant 0 : i32
    %c0_i32_0 = arith.constant 0 : i32
    %c0_i32_1 = arith.constant 0 : i32
    return %arg1, %c0_i32, %c0_i32_0 : i32, i32, i32
  }
  func.func @transform_8(%arg0: i32, %arg1: i32) -> (i32, i32, i32) {
    %c0_i32 = arith.constant 0 : i32
    %c0_i32_0 = arith.constant 0 : i32
    %c0_i32_1 = arith.constant 0 : i32
    return %arg1, %c0_i32, %c0_i32_0 : i32, i32, i32
  }
  func.func @transform_9(%arg0: i32, %arg1: i32) -> (i32, i32, i32) {
    %c0_i32 = arith.constant 0 : i32
    %c0_i32_0 = arith.constant 0 : i32
    %c0_i32_1 = arith.constant 0 : i32
    return %arg1, %c0_i32, %c0_i32_0 : i32, i32, i32
  }
  func.func @transform_10(%arg0: i32, %arg1: i32) -> (i32, i32, i32) {
    %c0_i32 = arith.constant 0 : i32
    %c0_i32_0 = arith.constant 0 : i32
    %c0_i32_1 = arith.constant 0 : i32
    return %arg1, %c0_i32, %c0_i32_0 : i32, i32, i32
  }
  func.func @transform_11(%arg0: i32, %arg1: i32) -> (i32, i32, i32) {
    %c0_i32 = arith.constant 0 : i32
    %c0_i32_0 = arith.constant 0 : i32
    %c0_i32_1 = arith.constant 0 : i32
    return %arg1, %c0_i32, %c0_i32_0 : i32, i32, i32
  }
  func.func @transform_12(%arg0: i32, %arg1: i32) -> (i32, i32, i32) {
    %c0_i32 = arith.constant 0 : i32
    %c0_i32_0 = arith.constant 0 : i32
    %c0_i32_1 = arith.constant 0 : i32
    return %arg1, %c0_i32, %c0_i32_0 : i32, i32, i32
  }
  func.func @transform_13(%arg0: i32, %arg1: i32) -> (i32, i32, i32) {
    %c0_i32 = arith.constant 0 : i32
    %c0_i32_0 = arith.constant 0 : i32
    %c0_i32_1 = arith.constant 0 : i32
    return %arg1, %c0_i32, %c0_i32_0 : i32, i32, i32
  }
  func.func @transform_14(%arg0: i32, %arg1: i32) -> (i32, i32, i32) {
    %c0_i32 = arith.constant 0 : i32
    %c0_i32_0 = arith.constant 0 : i32
    %c0_i32_1 = arith.constant 0 : i32
    return %arg1, %c0_i32, %c0_i32_0 : i32, i32, i32
  }
  func.func @transform_15(%arg0: i32, %arg1: i32) -> (i32, i32, i32) {
    %c0_i32 = arith.constant 0 : i32
    %c0_i32_0 = arith.constant 0 : i32
    %c0_i32_1 = arith.constant 0 : i32
    return %arg1, %c0_i32, %c0_i32_0 : i32, i32, i32
  }
  func.func @transform_16(%arg0: i32, %arg1: i32) -> (i32, i32, i32) {
    %c0_i32 = arith.constant 0 : i32
    %c0_i32_0 = arith.constant 0 : i32
    %c0_i32_1 = arith.constant 0 : i32
    return %arg1, %c0_i32, %c0_i32_0 : i32, i32, i32
  }
  func.func @transform_17(%arg0: i32, %arg1: i32) -> (i32, i32, i32) {
    %c0_i32 = arith.constant 0 : i32
    %c0_i32_0 = arith.constant 0 : i32
    %c0_i32_1 = arith.constant 0 : i32
    return %arg0, %c0_i32, %c0_i32_0 : i32, i32, i32
  }
}

</mosaic_0001>

<llo_original>
// kernel: tpu_custom_call.1
$region0: #{tpu_custom_call.1}
  #allocation0 [shape = 'u32[]', space=smem, size = 0x4, offset = 0x4, fixed_abs, tag = 'smem constant byte address 0x4 - core index']
  #allocation1 [shape = 'u32[144,128]{1,0:T(1,128)}', space=vmem, size = 0x12000, scoped, tag = 'internal scratch']
  %s0 = inlined_call_operand.hbm [shape: f32[2,8,32], index: 0, kind: input, shape index: {}]
  %s1 = inlined_call_operand.vmem [shape: f32[2,32,32], index: 1, kind: input, shape index: {}]
  %s2 = inlined_call_operand.vmem [shape: f32[2,1,32], index: 2, kind: input, shape index: {}]
  %s3 = inlined_call_operand.vmem [shape: f32[2,32,32], index: 3, kind: input, shape index: {}]
  %s4 = inlined_call_operand.vmem [shape: f32[2,1,32], index: 4, kind: input, shape index: {}]
  %s5 = inlined_call_operand.vmem [shape: f32[2,32,32], index: 5, kind: input, shape index: {}]
  %s6 = inlined_call_operand.vmem [shape: f32[2,1,32], index: 6, kind: input, shape index: {}]
  %s7 = inlined_call_operand.hbm [shape: f32[2,32,32], index: 7, kind: input, shape index: {}]
  %s8 = inlined_call_operand.vmem [shape: f32[2,1,32], index: 8, kind: input, shape index: {}]
  %s9 = inlined_call_operand.vmem [shape: f32[2,1,32], index: 9, kind: input, shape index: {}]
  %s10 = inlined_call_operand.vmem [shape: f32[2,1,32], index: 10, kind: input, shape index: {}]
  %s11 = inlined_call_operand.hbm [shape: f32[2,32,64], index: 11, kind: input, shape index: {}]
  %s12 = inlined_call_operand.vmem [shape: f32[2,1,64], index: 12, kind: input, shape index: {}]
  %s13 = inlined_call_operand.vmem [shape: f32[2,64,32], index: 13, kind: input, shape index: {}]
  %s14 = inlined_call_operand.vmem [shape: f32[2,1,32], index: 14, kind: input, shape index: {}]
  %s15 = inlined_call_operand.vmem [shape: f32[2,1,32], index: 15, kind: input, shape index: {}]
  %s16 = inlined_call_operand.vmem [shape: f32[2,1,32], index: 16, kind: input, shape index: {}]
  %s17 = inlined_call_operand.hbm [shape: f32[2,8,32], index: 17, kind: output, shape index: {}]
  %s18 = sld [smem:[#allocation0]]
  $region117: #{tpu_custom_call.1} parent=0
    _
  %s20 = ssub.s32 1, %s18
  %s21 = scalar_select 0, %s20, %s18
  $region1: #{tpu_custom_call.1} parent=0
    #allocation2 [shape = 'u8[8192]{0}', space=vmem, size = 0x2000, scoped, tag = 'input window, operand 0']
    #allocation3 [shape = 's32[2]{0}', space=sflag, size = 0x8, scoped, tag = 'scoped memory for tpu_custom_call.1']
    #allocation4 [shape = 's32[2]{0}', space=sflag, size = 0x8, scoped, tag = 'scoped memory for tpu_custom_call.1']
    #allocation5 [shape = 'u8[32768]{0}', space=vmem, size = 0x8000, scoped, tag = 'input window, operand 7']
    #allocation6 [shape = 's32[2]{0}', space=sflag, size = 0x8, scoped, tag = 'scoped memory for tpu_custom_call.1']
    #allocation7 [shape = 'u8[32768]{0}', space=vmem, size = 0x8000, scoped, tag = 'input window, operand 11']
    #allocation8 [shape = 'u8[8192]{0}', space=vmem, size = 0x2000, scoped, tag = 'output window, operand 0']
    %22 = vsyncpa [#allocation3], 0
    %s23 = scalar_lea.sflag [#allocation3], 1
    %24 = vsyncpa %s23, 0
    %25 = vsyncpa [#allocation6], 0
    %s26 = scalar_lea.sflag [#allocation6], 1
    %27 = vsyncpa %s26, 0
    %28 = vsyncpa [#allocation4], 0
    %s29 = scalar_lea.sflag [#allocation4], 1
    %30 = vsyncpa %s29, 0
    loop: start=0, step=1, limit=6
    $region2: #{tpu_custom_call.1} parent=1 // loop_pre_header
      _
    $region3: #{tpu_custom_call.1} parent=1 // loop_header
      %s32 = sphi 0, %s36
      %p33 = scmp.ge.s32.totalorder %s32, 6
      %s39 = sphi 0, %s51
      %s40 = sphi 0, %s47
      %s41 = sphi 0, %s39
      %s42 = sphi 0, %s40
      %s43 = sphi 0, %s41
      %s44 = sphi 0, %s42
      %s54 = sphi 0, %s56
      %s57 = sphi 0, %s54
      %s58 = sphi 0, %s57
      %s74 = sphi 0, %s58
      %s80 = sphi 0, %s82
      %s83 = sphi 0, %s80
      %s84 = sphi 0, %s83
      %s100 = sphi 0, %s84
      %s106 = sphi 0, %s108
      %s109 = sphi 0, %s106
      %s110 = sphi 0, %s109
      %s126 = sphi 0, %s110
      %s132 = sphi 0, %s134
      %s135 = sphi 0, %s132
      %s136 = sphi 0, %s135
      %s152 = sphi 0, %s136
      %s158 = sphi 0, %s160
      %s161 = sphi 0, %s158
      %s162 = sphi 0, %s161
      %s178 = sphi 0, %s162
      %s184 = sphi 0, %s186
      %s187 = sphi 0, %s184
      %s188 = sphi 0, %s187
      %s204 = sphi 0, %s188
      %s210 = sphi 0, %s212
      %s213 = sphi 0, %s210
      %s214 = sphi 0, %s213
      %s230 = sphi 0, %s214
      %s236 = sphi 0, %s238
      %s239 = sphi 0, %s236
      %s240 = sphi 0, %s239
      %s256 = sphi 0, %s240
      %s262 = sphi 0, %s264
      %s265 = sphi 0, %s262
      %s266 = sphi 0, %s265
      %s282 = sphi 0, %s266
      %s288 = sphi 0, %s290
      %s291 = sphi 0, %s288
      %s292 = sphi 0, %s291
      %s308 = sphi 0, %s292
      %s314 = sphi 0, %s316
      %s317 = sphi 0, %s314
      %s318 = sphi 0, %s317
      %s334 = sphi 0, %s318
      %s340 = sphi 0, %s342
      %s343 = sphi 0, %s340
      %s344 = sphi 0, %s343
      %s360 = sphi 0, %s344
      %s366 = sphi 0, %s368
      %s369 = sphi 0, %s366
      %s370 = sphi 0, %s369
      %s386 = sphi 0, %s370
      %s392 = sphi 0, %s394
      %s395 = sphi 0, %s392
      %s396 = sphi 0, %s395
      %s412 = sphi 0, %s396
      %s418 = sphi 0, %s420
      %s421 = sphi 0, %s418
      %s422 = sphi 0, %s421
      %s438 = sphi 0, %s422
      %s444 = sphi 0, %s446
      %s447 = sphi 0, %s444
      %s448 = sphi 0, %s447
      %s464 = sphi 0, %s448
      %s470 = sphi 0, %s472
      %s473 = sphi 0, %s470
      %s474 = sphi 0, %s473
      %s490 = sphi 0, %s474
      %s496 = sphi 0, %s498
      %s499 = sphi 0, %s496
      %s500 = sphi 0, %s499
      %s516 = sphi 0, %s500
    $region4: #{tpu_custom_call.1} parent=1 // loop_header_branch
      %35 = sbr.rel (%p33) target = $region8
    $region5: #{tpu_custom_call.1} parent=1 // loop_body
      %s37 = ssub.s32 %s32, 1
      %s38 = ssub.s32 %s32, 2
      %s45 = sadd.s32 1, %s40
      %p46 = scmp.ge.s32.totalorder %s45, 2
      %s47 = scalar_select %p46, 0, %s45
      %s48 = sadd.s32 1, %s39
      %s49 = scalar_select %p46, %s48, %s39
      %p50 = scmp.ge.s32.totalorder %s49, 2
      %s51 = scalar_select %p50, 0, %s49
      %s52 = ssub.s32 %s39, %s51
      %p53 = scmp.eq.s32.totalorder %s52, 0
      %s55 = sadd.s32 %s54, 1
      %s56 = scalar_select %p53, %s54, %s55
      %p59 = pneg %p53
      %p60 = scmp.eq.s32.totalorder %s32, 3
      %p61 = por %p59, %p60
      %p62 = scmp.ne.s32.totalorder %s54, %s57
      %p63 = scmp.eq.s32.totalorder %s32, 0
      %p64 = por %p62, %p63
      %p65 = scmp.ne.s32.totalorder %s54, %s57
      %p66 = scmp.eq.s32.totalorder %s37, 3
      %p67 = por %p65, %p66
      %p68 = scmp.ne.s32.totalorder %s57, %s58
      %p69 = scmp.eq.s32.totalorder %s37, 0
      %p70 = por %p68, %p69
      %p71 = scmp.ne.s32.totalorder %s57, %s58
      %p72 = scmp.eq.s32.totalorder %s38, 3
      %p73 = por %p71, %p72
      %p75 = scmp.ne.s32.totalorder %s58, %s74
      %p76 = scmp.eq.s32.totalorder %s38, 0
      %p77 = por %p75, %p76
      %s78 = ssub.s32 %s40, %s47
      %p79 = scmp.eq.s32.totalorder %s78, 0
      %s81 = sadd.s32 %s80, 1
      %s82 = scalar_select %p79, %s80, %s81
      %p85 = pneg %p79
      %p86 = scmp.eq.s32.totalorder %s32, 3
      %p87 = por %p85, %p86
      %p88 = scmp.ne.s32.totalorder %s80, %s83
      %p89 = scmp.eq.s32.totalorder %s32, 0
      %p90 = por %p88, %p89
      %p91 = scmp.ne.s32.totalorder %s80, %s83
      %p92 = scmp.eq.s32.totalorder %s37, 3
      %p93 = por %p91, %p92
      %p94 = scmp.ne.s32.totalorder %s83, %s84
      %p95 = scmp.eq.s32.totalorder %s37, 0
      %p96 = por %p94, %p95
      %p97 = scmp.ne.s32.totalorder %s83, %s84
      %p98 = scmp.eq.s32.totalorder %s38, 3
      %p99 = por %p97, %p98
      %p101 = scmp.ne.s32.totalorder %s84, %s100
      %p102 = scmp.eq.s32.totalorder %s38, 0
      %p103 = por %p101, %p102
      %s104 = ssub.s32 %s40, %s47
      %p105 = scmp.eq.s32.totalorder %s104, 0
      %s107 = sadd.s32 %s106, 1
      %s108 = scalar_select %p105, %s106, %s107
      %p111 = pneg %p105
      %p112 = scmp.eq.s32.totalorder %s32, 3
      %p113 = por %p111, %p112
      %p114 = scmp.ne.s32.totalorder %s106, %s109
      %p115 = scmp.eq.s32.totalorder %s32, 0
      %p116 = por %p114, %p115
      %p117 = scmp.ne.s32.totalorder %s106, %s109
      %p118 = scmp.eq.s32.totalorder %s37, 3
      %p119 = por %p117, %p118
      %p120 = scmp.ne.s32.totalorder %s109, %s110
      %p121 = scmp.eq.s32.totalorder %s37, 0
      %p122 = por %p120, %p121
      %p123 = scmp.ne.s32.totalorder %s109, %s110
      %p124 = scmp.eq.s32.totalorder %s38, 3
      %p125 = por %p123, %p124
      %p127 = scmp.ne.s32.totalorder %s110, %s126
      %p128 = scmp.eq.s32.totalorder %s38, 0
      %p129 = por %p127, %p128
      %s130 = ssub.s32 %s40, %s47
      %p131 = scmp.eq.s32.totalorder %s130, 0
      %s133 = sadd.s32 %s132, 1
      %s134 = scalar_select %p131, %s132, %s133
      %p137 = pneg %p131
      %p138 = scmp.eq.s32.totalorder %s32, 3
      %p139 = por %p137, %p138
      %p140 = scmp.ne.s32.totalorder %s132, %s135
      %p141 = scmp.eq.s32.totalorder %s32, 0
      %p142 = por %p140, %p141
      %p143 = scmp.ne.s32.totalorder %s132, %s135
      %p144 = scmp.eq.s32.totalorder %s37, 3
      %p145 = por %p143, %p144
      %p146 = scmp.ne.s32.totalorder %s135, %s136
      %p147 = scmp.eq.s32.totalorder %s37, 0
      %p148 = por %p146, %p147
      %p149 = scmp.ne.s32.totalorder %s135, %s136
      %p150 = scmp.eq.s32.totalorder %s38, 3
      %p151 = por %p149, %p150
      %p153 = scmp.ne.s32.totalorder %s136, %s152
      %p154 = scmp.eq.s32.totalorder %s38, 0
      %p155 = por %p153, %p154
      %s156 = ssub.s32 %s40, %s47
      %p157 = scmp.eq.s32.totalorder %s156, 0
      %s159 = sadd.s32 %s158, 1
      %s160 = scalar_select %p157, %s158, %s159
      %p163 = pneg %p157
      %p164 = scmp.eq.s32.totalorder %s32, 3
      %p165 = por %p163, %p164
      %p166 = scmp.ne.s32.totalorder %s158, %s161
      %p167 = scmp.eq.s32.totalorder %s32, 0
      %p168 = por %p166, %p167
      %p169 = scmp.ne.s32.totalorder %s158, %s161
      %p170 = scmp.eq.s32.totalorder %s37, 3
      %p171 = por %p169, %p170
      %p172 = scmp.ne.s32.totalorder %s161, %s162
      %p173 = scmp.eq.s32.totalorder %s37, 0
      %p174 = por %p172, %p173
      %p175 = scmp.ne.s32.totalorder %s161, %s162
      %p176 = scmp.eq.s32.totalorder %s38, 3
      %p177 = por %p175, %p176
      %p179 = scmp.ne.s32.totalorder %s162, %s178
      %p180 = scmp.eq.s32.totalorder %s38, 0
      %p181 = por %p179, %p180
      %s182 = ssub.s32 %s40, %s47
      %p183 = scmp.eq.s32.totalorder %s182, 0
      %s185 = sadd.s32 %s184, 1
      %s186 = scalar_select %p183, %s184, %s185
      %p189 = pneg %p183
      %p190 = scmp.eq.s32.totalorder %s32, 3
      %p191 = por %p189, %p190
      %p192 = scmp.ne.s32.totalorder %s184, %s187
      %p193 = scmp.eq.s32.totalorder %s32, 0
      %p194 = por %p192, %p193
      %p195 = scmp.ne.s32.totalorder %s184, %s187
      %p196 = scmp.eq.s32.totalorder %s37, 3
      %p197 = por %p195, %p196
      %p198 = scmp.ne.s32.totalorder %s187, %s188
      %p199 = scmp.eq.s32.totalorder %s37, 0
      %p200 = por %p198, %p199
      %p201 = scmp.ne.s32.totalorder %s187, %s188
      %p202 = scmp.eq.s32.totalorder %s38, 3
      %p203 = por %p201, %p202
      %p205 = scmp.ne.s32.totalorder %s188, %s204
      %p206 = scmp.eq.s32.totalorder %s38, 0
      %p207 = por %p205, %p206
      %s208 = ssub.s32 %s40, %s47
      %p209 = scmp.eq.s32.totalorder %s208, 0
      %s211 = sadd.s32 %s210, 1
      %s212 = scalar_select %p209, %s210, %s211
      %p215 = pneg %p209
      %p216 = scmp.eq.s32.totalorder %s32, 3
      %p217 = por %p215, %p216
      %p218 = scmp.ne.s32.totalorder %s210, %s213
      %p219 = scmp.eq.s32.totalorder %s32, 0
      %p220 = por %p218, %p219
      %p221 = scmp.ne.s32.totalorder %s210, %s213
      %p222 = scmp.eq.s32.totalorder %s37, 3
      %p223 = por %p221, %p222
      %p224 = scmp.ne.s32.totalorder %s213, %s214
      %p225 = scmp.eq.s32.totalorder %s37, 0
      %p226 = por %p224, %p225
      %p227 = scmp.ne.s32.totalorder %s213, %s214
      %p228 = scmp.eq.s32.totalorder %s38, 3
      %p229 = por %p227, %p228
      %p231 = scmp.ne.s32.totalorder %s214, %s230
      %p232 = scmp.eq.s32.totalorder %s38, 0
      %p233 = por %p231, %p232
      %s234 = ssub.s32 %s40, %s47
      %p235 = scmp.eq.s32.totalorder %s234, 0
      %s237 = sadd.s32 %s236, 1
      %s238 = scalar_select %p235, %s236, %s237
      %p241 = pneg %p235
      %p242 = scmp.eq.s32.totalorder %s32, 3
      %p243 = por %p241, %p242
      %p244 = scmp.ne.s32.totalorder %s236, %s239
      %p245 = scmp.eq.s32.totalorder %s32, 0
      %p246 = por %p244, %p245
      %p247 = scmp.ne.s32.totalorder %s236, %s239
      %p248 = scmp.eq.s32.totalorder %s37, 3
      %p249 = por %p247, %p248
      %p250 = scmp.ne.s32.totalorder %s239, %s240
      %p251 = scmp.eq.s32.totalorder %s37, 0
      %p252 = por %p250, %p251
      %p253 = scmp.ne.s32.totalorder %s239, %s240
      %p254 = scmp.eq.s32.totalorder %s38, 3
      %p255 = por %p253, %p254
      %p257 = scmp.ne.s32.totalorder %s240, %s256
      %p258 = scmp.eq.s32.totalorder %s38, 0
      %p259 = por %p257, %p258
      %s260 = ssub.s32 %s40, %s47
      %p261 = scmp.eq.s32.totalorder %s260, 0
      %s263 = sadd.s32 %s262, 1
      %s264 = scalar_select %p261, %s262, %s263
      %p267 = pneg %p261
      %p268 = scmp.eq.s32.totalorder %s32, 3
      %p269 = por %p267, %p268
      %p270 = scmp.ne.s32.totalorder %s262, %s265
      %p271 = scmp.eq.s32.totalorder %s32, 0
      %p272 = por %p270, %p271
      %p273 = scmp.ne.s32.totalorder %s262, %s265
      %p274 = scmp.eq.s32.totalorder %s37, 3
      %p275 = por %p273, %p274
      %p276 = scmp.ne.s32.totalorder %s265, %s266
      %p277 = scmp.eq.s32.totalorder %s37, 0
      %p278 = por %p276, %p277
      %p279 = scmp.ne.s32.totalorder %s265, %s266
      %p280 = scmp.eq.s32.totalorder %s38, 3
      %p281 = por %p279, %p280
      %p283 = scmp.ne.s32.totalorder %s266, %s282
      %p284 = scmp.eq.s32.totalorder %s38, 0
      %p285 = por %p283, %p284
      %s286 = ssub.s32 %s40, %s47
      %p287 = scmp.eq.s32.totalorder %s286, 0
      %s289 = sadd.s32 %s288, 1
      %s290 = scalar_select %p287, %s288, %s289
      %p293 = pneg %p287
      %p294 = scmp.eq.s32.totalorder %s32, 3
      %p295 = por %p293, %p294
      %p296 = scmp.ne.s32.totalorder %s288, %s291
      %p297 = scmp.eq.s32.totalorder %s32, 0
      %p298 = por %p296, %p297
      %p299 = scmp.ne.s32.totalorder %s288, %s291
      %p300 = scmp.eq.s32.totalorder %s37, 3
      %p301 = por %p299, %p300
      %p302 = scmp.ne.s32.totalorder %s291, %s292
      %p303 = scmp.eq.s32.totalorder %s37, 0
      %p304 = por %p302, %p303
      %p305 = scmp.ne.s32.totalorder %s291, %s292
      %p306 = scmp.eq.s32.totalorder %s38, 3
      %p307 = por %p305, %p306
      %p309 = scmp.ne.s32.totalorder %s292, %s308
      %p310 = scmp.eq.s32.totalorder %s38, 0
      %p311 = por %p309, %p310
      %s312 = ssub.s32 %s40, %s47
      %p313 = scmp.eq.s32.totalorder %s312, 0
      %s315 = sadd.s32 %s314, 1
      %s316 = scalar_select %p313, %s314, %s315
      %p319 = pneg %p313
      %p320 = scmp.eq.s32.totalorder %s32, 3
      %p321 = por %p319, %p320
      %p322 = scmp.ne.s32.totalorder %s314, %s317
      %p323 = scmp.eq.s32.totalorder %s32, 0
      %p324 = por %p322, %p323
      %p325 = scmp.ne.s32.totalorder %s314, %s317
      %p326 = scmp.eq.s32.totalorder %s37, 3
      %p327 = por %p325, %p326
      %p328 = scmp.ne.s32.totalorder %s317, %s318
      %p329 = scmp.eq.s32.totalorder %s37, 0
      %p330 = por %p328, %p329
      %p331 = scmp.ne.s32.totalorder %s317, %s318
      %p332 = scmp.eq.s32.totalorder %s38, 3
      %p333 = por %p331, %p332
      %p335 = scmp.ne.s32.totalorder %s318, %s334
      %p336 = scmp.eq.s32.totalorder %s38, 0
      %p337 = por %p335, %p336
      %s338 = ssub.s32 %s40, %s47
      %p339 = scmp.eq.s32.totalorder %s338, 0
      %s341 = sadd.s32 %s340, 1
      %s342 = scalar_select %p339, %s340, %s341
      %p345 = pneg %p339
      %p346 = scmp.eq.s32.totalorder %s32, 3
      %p347 = por %p345, %p346
      %p348 = scmp.ne.s32.totalorder %s340, %s343
      %p349 = scmp.eq.s32.totalorder %s32, 0
      %p350 = por %p348, %p349
      %p351 = scmp.ne.s32.totalorder %s340, %s343
      %p352 = scmp.eq.s32.totalorder %s37, 3
      %p353 = por %p351, %p352
      %p354 = scmp.ne.s32.totalorder %s343, %s344
      %p355 = scmp.eq.s32.totalorder %s37, 0
      %p356 = por %p354, %p355
      %p357 = scmp.ne.s32.totalorder %s343, %s344
      %p358 = scmp.eq.s32.totalorder %s38, 3
      %p359 = por %p357, %p358
      %p361 = scmp.ne.s32.totalorder %s344, %s360
      %p362 = scmp.eq.s32.totalorder %s38, 0
      %p363 = por %p361, %p362
      %s364 = ssub.s32 %s40, %s47
      %p365 = scmp.eq.s32.totalorder %s364, 0
      %s367 = sadd.s32 %s366, 1
      %s368 = scalar_select %p365, %s366, %s367
      %p371 = pneg %p365
      %p372 = scmp.eq.s32.totalorder %s32, 3
      %p373 = por %p371, %p372
      %p374 = scmp.ne.s32.totalorder %s366, %s369
      %p375 = scmp.eq.s32.totalorder %s32, 0
      %p376 = por %p374, %p375
      %p377 = scmp.ne.s32.totalorder %s366, %s369
      %p378 = scmp.eq.s32.totalorder %s37, 3
      %p379 = por %p377, %p378
      %p380 = scmp.ne.s32.totalorder %s369, %s370
      %p381 = scmp.eq.s32.totalorder %s37, 0
      %p382 = por %p380, %p381
      %p383 = scmp.ne.s32.totalorder %s369, %s370
      %p384 = scmp.eq.s32.totalorder %s38, 3
      %p385 = por %p383, %p384
      %p387 = scmp.ne.s32.totalorder %s370, %s386
      %p388 = scmp.eq.s32.totalorder %s38, 0
      %p389 = por %p387, %p388
      %s390 = ssub.s32 %s40, %s47
      %p391 = scmp.eq.s32.totalorder %s390, 0
      %s393 = sadd.s32 %s392, 1
      %s394 = scalar_select %p391, %s392, %s393
      %p397 = pneg %p391
      %p398 = scmp.eq.s32.totalorder %s32, 3
      %p399 = por %p397, %p398
      %p400 = scmp.ne.s32.totalorder %s392, %s395
      %p401 = scmp.eq.s32.totalorder %s32, 0
      %p402 = por %p400, %p401
      %p403 = scmp.ne.s32.totalorder %s392, %s395
      %p404 = scmp.eq.s32.totalorder %s37, 3
      %p405 = por %p403, %p404
      %p406 = scmp.ne.s32.totalorder %s395, %s396
      %p407 = scmp.eq.s32.totalorder %s37, 0
      %p408 = por %p406, %p407
      %p409 = scmp.ne.s32.totalorder %s395, %s396
      %p410 = scmp.eq.s32.totalorder %s38, 3
      %p411 = por %p409, %p410
      %p413 = scmp.ne.s32.totalorder %s396, %s412
      %p414 = scmp.eq.s32.totalorder %s38, 0
      %p415 = por %p413, %p414
      %s416 = ssub.s32 %s40, %s47
      %p417 = scmp.eq.s32.totalorder %s416, 0
      %s419 = sadd.s32 %s418, 1
      %s420 = scalar_select %p417, %s418, %s419
      %p423 = pneg %p417
      %p424 = scmp.eq.s32.totalorder %s32, 3
      %p425 = por %p423, %p424
      %p426 = scmp.ne.s32.totalorder %s418, %s421
      %p427 = scmp.eq.s32.totalorder %s32, 0
      %p428 = por %p426, %p427
      %p429 = scmp.ne.s32.totalorder %s418, %s421
      %p430 = scmp.eq.s32.totalorder %s37, 3
      %p431 = por %p429, %p430
      %p432 = scmp.ne.s32.totalorder %s421, %s422
      %p433 = scmp.eq.s32.totalorder %s37, 0
      %p434 = por %p432, %p433
      %p435 = scmp.ne.s32.totalorder %s421, %s422
      %p436 = scmp.eq.s32.totalorder %s38, 3
      %p437 = por %p435, %p436
      %p439 = scmp.ne.s32.totalorder %s422, %s438
      %p440 = scmp.eq.s32.totalorder %s38, 0
      %p441 = por %p439, %p440
      %s442 = ssub.s32 %s40, %s47
      %p443 = scmp.eq.s32.totalorder %s442, 0
      %s445 = sadd.s32 %s444, 1
      %s446 = scalar_select %p443, %s444, %s445
      %p449 = pneg %p443
      %p450 = scmp.eq.s32.totalorder %s32, 3
      %p451 = por %p449, %p450
      %p452 = scmp.ne.s32.totalorder %s444, %s447
      %p453 = scmp.eq.s32.totalorder %s32, 0
      %p454 = por %p452, %p453
      %p455 = scmp.ne.s32.totalorder %s444, %s447
      %p456 = scmp.eq.s32.totalorder %s37, 3
      %p457 = por %p455, %p456
      %p458 = scmp.ne.s32.totalorder %s447, %s448
      %p459 = scmp.eq.s32.totalorder %s37, 0
      %p460 = por %p458, %p459
      %p461 = scmp.ne.s32.totalorder %s447, %s448
      %p462 = scmp.eq.s32.totalorder %s38, 3
      %p463 = por %p461, %p462
      %p465 = scmp.ne.s32.totalorder %s448, %s464
      %p466 = scmp.eq.s32.totalorder %s38, 0
      %p467 = por %p465, %p466
      %s468 = ssub.s32 %s40, %s47
      %p469 = scmp.eq.s32.totalorder %s468, 0
      %s471 = sadd.s32 %s470, 1
      %s472 = scalar_select %p469, %s470, %s471
      %p475 = pneg %p469
      %p476 = scmp.eq.s32.totalorder %s32, 3
      %p477 = por %p475, %p476
      %p478 = scmp.ne.s32.totalorder %s470, %s473
      %p479 = scmp.eq.s32.totalorder %s32, 0
      %p480 = por %p478, %p479
      %p481 = scmp.ne.s32.totalorder %s470, %s473
      %p482 = scmp.eq.s32.totalorder %s37, 3
      %p483 = por %p481, %p482
      %p484 = scmp.ne.s32.totalorder %s473, %s474
      %p485 = scmp.eq.s32.totalorder %s37, 0
      %p486 = por %p484, %p485
      %p487 = scmp.ne.s32.totalorder %s473, %s474
      %p488 = scmp.eq.s32.totalorder %s38, 3
      %p489 = por %p487, %p488
      %p491 = scmp.ne.s32.totalorder %s474, %s490
      %p492 = scmp.eq.s32.totalorder %s38, 0
      %p493 = por %p491, %p492
      %s494 = ssub.s32 %s39, %s51
      %p495 = scmp.eq.s32.totalorder %s494, 0
      %s497 = sadd.s32 %s496, 1
      %s498 = scalar_select %p495, %s496, %s497
      %p501 = pneg %p495
      %p502 = scmp.eq.s32.totalorder %s32, 3
      %p503 = por %p501, %p502
      %p504 = scmp.ne.s32.totalorder %s496, %s499
      %p505 = scmp.eq.s32.totalorder %s32, 0
      %p506 = por %p504, %p505
      %p507 = scmp.ne.s32.totalorder %s496, %s499
      %p508 = scmp.eq.s32.totalorder %s37, 3
      %p509 = por %p507, %p508
      %p510 = scmp.ne.s32.totalorder %s499, %s500
      %p511 = scmp.eq.s32.totalorder %s37, 0
      %p512 = por %p510, %p511
      %p513 = scmp.ne.s32.totalorder %s499, %s500
      %p514 = scmp.eq.s32.totalorder %s38, 3
      %p515 = por %p513, %p514
      %p517 = scmp.ne.s32.totalorder %s500, %s516
      %p518 = scmp.eq.s32.totalorder %s38, 0
      %p519 = por %p517, %p518
      %p520 = scmp.le.s32.totalorder 1, %s32
      %p521 = scmp.lt.s32.totalorder %s32, 5
      %p522 = pnand %p520, %p521
      %p523 = pneg %p522
      // Predicated region
      $region9: #{tpu_custom_call.1} parent=5 // pred_check
        _
      $region10: #{tpu_custom_call.1} parent=5 // pred_check_branch
        %525 = sbr.rel (%p522) target = $region12
      $region11: #{tpu_custom_call.1} parent=5 // pred_region
        %s526 = ssub.s32 %s32, 1
      $region12: #{tpu_custom_call.1} parent=5 // pred_fallthru
        _
      %p527 = scmp.lt.s32.totalorder %s32, 4
      // Predicated region
      $region13: #{tpu_custom_call.1} parent=5 // pred_check
        %p528 = pneg %p527
      $region14: #{tpu_custom_call.1} parent=5 // pred_check_branch
        %530 = sbr.rel (%p528) target = $region16
      $region15: #{tpu_custom_call.1} parent=5 // pred_region
        // Predicated region
        $region17: #{tpu_custom_call.1} parent=15 // pred_check
          %p531 = pneg %p64
        $region18: #{tpu_custom_call.1} parent=15 // pred_check_branch
          %533 = sbr.rel (%p531) target = $region20
        $region19: #{tpu_custom_call.1} parent=15 // pred_region
          %s534 = sand.u32 %s54, 1
          %s535 = scalar_lea.sflag [#allocation3], %s534
          %s536 = sand.u32 %s54, 1
          %s537 = smul.addr %s536, 8
          %s538 = scalar_lea.vmem [#allocation2], %s537
          %s540 = ssub.s32 128, 128
          %541 = vsyncadd %s535, %s540
          %s542 = smul.addr %s39, 128
          %s543 = scalar_lea.hbm %s0, %s542
          %s545 = sshll.u32 %s538, 4
          %s546 = int_to_ptr.vmem [resolvable:$true] %s545
          %548 = dma.hbm_to_vmem [thread:$0]  %s543, 128, %s546, %s535
        $region20: #{tpu_custom_call.1} parent=15 // pred_fallthru
          _
        // Predicated region
        $region21: #{tpu_custom_call.1} parent=15 // pred_check
          %p549 = pneg %p90
        $region22: #{tpu_custom_call.1} parent=15 // pred_check_branch
          %551 = sbr.rel (%p549) target = $region24
        $region23: #{tpu_custom_call.1} parent=15 // pred_region
          %p552 = scmp.lt.s32.totalorder %s40, 1
          %s553 = scalar_select %p552, %s40, 1
          %s554 = smul.addr %s553, 4
          %s555 = smul.addr %s554, 8
          %s556 = scalar_lea.vmem %s1, %s555
        $region24: #{tpu_custom_call.1} parent=15 // pred_fallthru
          _
        // Predicated region
        $region25: #{tpu_custom_call.1} parent=15 // pred_check
          %p557 = pneg %p116
        $region26: #{tpu_custom_call.1} parent=15 // pred_check_branch
          %559 = sbr.rel (%p557) target = $region28
        $region27: #{tpu_custom_call.1} parent=15 // pred_region
          %p560 = scmp.lt.s32.totalorder %s40, 1
          %s561 = scalar_select %p560, %s40, 1
          %s562 = scalar_lea.vmem %s2, %s561
        $region28: #{tpu_custom_call.1} parent=15 // pred_fallthru
          _
        // Predicated region
        $region29: #{tpu_custom_call.1} parent=15 // pred_check
          %p563 = pneg %p142
        $region30: #{tpu_custom_call.1} parent=15 // pred_check_branch
          %565 = sbr.rel (%p563) target = $region32
        $region31: #{tpu_custom_call.1} parent=15 // pred_region
          %p566 = scmp.lt.s32.totalorder %s40, 1
          %s567 = scalar_select %p566, %s40, 1
          %s568 = smul.addr %s567, 4
          %s569 = smul.addr %s568, 8
          %s570 = scalar_lea.vmem %s3, %s569
        $region32: #{tpu_custom_call.1} parent=15 // pred_fallthru
          _
        // Predicated region
        $region33: #{tpu_custom_call.1} parent=15 // pred_check
          %p571 = pneg %p168
        $region34: #{tpu_custom_call.1} parent=15 // pred_check_branch
          %573 = sbr.rel (%p571) target = $region36
        $region35: #{tpu_custom_call.1} parent=15 // pred_region
          %p574 = scmp.lt.s32.totalorder %s40, 1
          %s575 = scalar_select %p574, %s40, 1
          %s576 = scalar_lea.vmem %s4, %s575
        $region36: #{tpu_custom_call.1} parent=15 // pred_fallthru
          _
        // Predicated region
        $region37: #{tpu_custom_call.1} parent=15 // pred_check
          %p577 = pneg %p194
        $region38: #{tpu_custom_call.1} parent=15 // pred_check_branch
          %579 = sbr.rel (%p577) target = $region40
        $region39: #{tpu_custom_call.1} parent=15 // pred_region
          %p580 = scmp.lt.s32.totalorder %s40, 1
          %s581 = scalar_select %p580, %s40, 1
          %s582 = smul.addr %s581, 4
          %s583 = smul.addr %s582, 8
          %s584 = scalar_lea.vmem %s5, %s583
        $region40: #{tpu_custom_call.1} parent=15 // pred_fallthru
          _
        // Predicated region
        $region41: #{tpu_custom_call.1} parent=15 // pred_check
          %p585 = pneg %p220
        $region42: #{tpu_custom_call.1} parent=15 // pred_check_branch
          %587 = sbr.rel (%p585) target = $region44
        $region43: #{tpu_custom_call.1} parent=15 // pred_region
          %p588 = scmp.lt.s32.totalorder %s40, 1
          %s589 = scalar_select %p588, %s40, 1
          %s590 = scalar_lea.vmem %s6, %s589
        $region44: #{tpu_custom_call.1} parent=15 // pred_fallthru
          _
        // Predicated region
        $region45: #{tpu_custom_call.1} parent=15 // pred_check
          %p591 = pneg %p246
        $region46: #{tpu_custom_call.1} parent=15 // pred_check_branch
          %593 = sbr.rel (%p591) target = $region48
        $region47: #{tpu_custom_call.1} parent=15 // pred_region
          %s594 = sand.u32 %s32, 1
          %s595 = scalar_lea.sflag [#allocation6], %s594
          %s596 = sand.u32 %s236, 1
          %s597 = smul.addr %s596, 32
          %s598 = scalar_lea.vmem [#allocation5], %s597
          %s600 = ssub.s32 512, 512
          %601 = vsyncadd %s595, %s600
          %s602 = smul.addr %s40, 4
          %s603 = smul.addr %s602, 128
          %s604 = scalar_lea.hbm %s7, %s603
          %s605 = sshll.u32 %s598, 4
          %s606 = int_to_ptr.vmem [resolvable:$true] %s605
          %611 = dma.hbm_to_vmem [thread:$0]  %s604, 512, %s606, %s595, 128, 128, 8
        $region48: #{tpu_custom_call.1} parent=15 // pred_fallthru
          _
        // Predicated region
        $region49: #{tpu_custom_call.1} parent=15 // pred_check
          %p612 = pneg %p272
        $region50: #{tpu_custom_call.1} parent=15 // pred_check_branch
          %614 = sbr.rel (%p612) target = $region52
        $region51: #{tpu_custom_call.1} parent=15 // pred_region
          %p615 = scmp.lt.s32.totalorder %s40, 1
          %s616 = scalar_select %p615, %s40, 1
          %s617 = scalar_lea.vmem %s8, %s616
        $region52: #{tpu_custom_call.1} parent=15 // pred_fallthru
          _
        // Predicated region
        $region53: #{tpu_custom_call.1} parent=15 // pred_check
          %p618 = pneg %p298
        $region54: #{tpu_custom_call.1} parent=15 // pred_check_branch
          %620 = sbr.rel (%p618) target = $region56
        $region55: #{tpu_custom_call.1} parent=15 // pred_region
          %p621 = scmp.lt.s32.totalorder %s40, 1
          %s622 = scalar_select %p621, %s40, 1
          %s623 = scalar_lea.vmem %s9, %s622
        $region56: #{tpu_custom_call.1} parent=15 // pred_fallthru
          _
        // Predicated region
        $region57: #{tpu_custom_call.1} parent=15 // pred_check
          %p624 = pneg %p324
        $region58: #{tpu_custom_call.1} parent=15 // pred_check_branch
          %626 = sbr.rel (%p624) target = $region60
        $region59: #{tpu_custom_call.1} parent=15 // pred_region
          %p627 = scmp.lt.s32.totalorder %s40, 1
          %s628 = scalar_select %p627, %s40, 1
          %s629 = scalar_lea.vmem %s10, %s628
        $region60: #{tpu_custom_call.1} parent=15 // pred_fallthru
          _
        // Predicated region
        $region61: #{tpu_custom_call.1} parent=15 // pred_check
          %p630 = pneg %p350
        $region62: #{tpu_custom_call.1} parent=15 // pred_check_branch
          %632 = sbr.rel (%p630) target = $region64
        $region63: #{tpu_custom_call.1} parent=15 // pred_region
          %s633 = sand.u32 %s32, 1
          %s634 = scalar_lea.sflag [#allocation6], %s633
          %s635 = sand.u32 %s340, 1
          %s636 = smul.addr %s635, 32
          %s637 = scalar_lea.vmem [#allocation7], %s636
          %s639 = ssub.s32 512, 512
          %640 = vsyncadd %s634, %s639
          %s641 = smul.addr %s40, 4
          %s642 = smul.addr %s641, 128
          %s643 = scalar_lea.hbm %s11, %s642
          %s644 = sshll.u32 %s637, 4
          %s645 = int_to_ptr.vmem [resolvable:$true] %s644
          %650 = dma.hbm_to_vmem [thread:$0]  %s643, 512, %s645, %s634, 128, 128, 8
        $region64: #{tpu_custom_call.1} parent=15 // pred_fallthru
          _
        // Predicated region
        $region65: #{tpu_custom_call.1} parent=15 // pred_check
          %p651 = pneg %p376
        $region66: #{tpu_custom_call.1} parent=15 // pred_check_branch
          %653 = sbr.rel (%p651) target = $region68
        $region67: #{tpu_custom_call.1} parent=15 // pred_region
          %p654 = scmp.lt.s32.totalorder %s40, 1
          %s655 = scalar_select %p654, %s40, 1
          %s656 = scalar_lea.vmem %s12, %s655
        $region68: #{tpu_custom_call.1} parent=15 // pred_fallthru
          _
        // Predicated region
        $region69: #{tpu_custom_call.1} parent=15 // pred_check
          %p657 = pneg %p402
        $region70: #{tpu_custom_call.1} parent=15 // pred_check_branch
          %659 = sbr.rel (%p657) target = $region72
        $region71: #{tpu_custom_call.1} parent=15 // pred_region
          %p660 = scmp.lt.s32.totalorder %s40, 1
          %s661 = scalar_select %p660, %s40, 1
          %s662 = smul.addr %s661, 8
          %s663 = smul.addr %s662, 8
          %s664 = scalar_lea.vmem %s13, %s663
        $region72: #{tpu_custom_call.1} parent=15 // pred_fallthru
          _
        // Predicated region
        $region73: #{tpu_custom_call.1} parent=15 // pred_check
          %p665 = pneg %p428
        $region74: #{tpu_custom_call.1} parent=15 // pred_check_branch
          %667 = sbr.rel (%p665) target = $region76
        $region75: #{tpu_custom_call.1} parent=15 // pred_region
          %p668 = scmp.lt.s32.totalorder %s40, 1
          %s669 = scalar_select %p668, %s40, 1
          %s670 = scalar_lea.vmem %s14, %s669
        $region76: #{tpu_custom_call.1} parent=15 // pred_fallthru
          _
        // Predicated region
        $region77: #{tpu_custom_call.1} parent=15 // pred_check
          %p671 = pneg %p454
        $region78: #{tpu_custom_call.1} parent=15 // pred_check_branch
          %673 = sbr.rel (%p671) target = $region80
        $region79: #{tpu_custom_call.1} parent=15 // pred_region
          %p674 = scmp.lt.s32.totalorder %s40, 1
          %s675 = scalar_select %p674, %s40, 1
          %s676 = scalar_lea.vmem %s15, %s675
        $region80: #{tpu_custom_call.1} parent=15 // pred_fallthru
          _
        // Predicated region
        $region81: #{tpu_custom_call.1} parent=15 // pred_check
          %p677 = pneg %p480
        $region82: #{tpu_custom_call.1} parent=15 // pred_check_branch
          %679 = sbr.rel (%p677) target = $region84
        $region83: #{tpu_custom_call.1} parent=15 // pred_region
          %p680 = scmp.lt.s32.totalorder %s40, 1
          %s681 = scalar_select %p680, %s40, 1
          %s682 = scalar_lea.vmem %s16, %s681
        $region84: #{tpu_custom_call.1} parent=15 // pred_fallthru
          _
      $region16: #{tpu_custom_call.1} parent=5 // pred_fallthru
        _
      %p683 = scmp.le.s32.totalorder 1, %s32
      %p684 = scmp.lt.s32.totalorder %s32, 5
      %p685 = pnand %p683, %p684
      %p686 = pneg %p685
      // Predicated region
      $region85: #{tpu_custom_call.1} parent=5 // pred_check
        _
      $region86: #{tpu_custom_call.1} parent=5 // pred_check_branch
        %688 = sbr.rel (%p685) target = $region88
      $region87: #{tpu_custom_call.1} parent=5 // pred_region
        %s689 = ssub.s32 %s32, 1
        %s690 = sand.u32 %s57, 1
        %s691 = scalar_lea.sflag [#allocation3], %s690
        %s692 = sand.u32 %s57, 1
        %s693 = smul.addr %s692, 8
        %s694 = scalar_lea.vmem [#allocation2], %s693
        // Predicated region
        $region89: #{tpu_custom_call.1} parent=87 // pred_check
          %p695 = pneg %p70
        $region90: #{tpu_custom_call.1} parent=87 // pred_check_branch
          %697 = sbr.rel (%p695) target = $region92
        $region91: #{tpu_custom_call.1} parent=87 // pred_region
          %698 = dma.done %s691, 128
        $region92: #{tpu_custom_call.1} parent=87 // pred_fallthru
          _
        %s699 = sand.u32 %s37, 1
        %s700 = scalar_lea.sflag [#allocation6], %s699
        %s701 = sand.u32 %s239, 1
        %s702 = smul.addr %s701, 32
        %s703 = scalar_lea.vmem [#allocation5], %s702
        // Predicated region
        $region93: #{tpu_custom_call.1} parent=87 // pred_check
          %p704 = pneg %p252
        $region94: #{tpu_custom_call.1} parent=87 // pred_check_branch
          %706 = sbr.rel (%p704) target = $region96
        $region95: #{tpu_custom_call.1} parent=87 // pred_region
          %707 = dma.done %s700, 512
        $region96: #{tpu_custom_call.1} parent=87 // pred_fallthru
          _
        %s708 = sand.u32 %s37, 1
        %s709 = scalar_lea.sflag [#allocation6], %s708
        %s710 = sand.u32 %s343, 1
        %s711 = smul.addr %s710, 32
        %s712 = scalar_lea.vmem [#allocation7], %s711
        // Predicated region
        $region97: #{tpu_custom_call.1} parent=87 // pred_check
          %p713 = pneg %p356
        $region98: #{tpu_custom_call.1} parent=87 // pred_check_branch
          %715 = sbr.rel (%p713) target = $region100
        $region99: #{tpu_custom_call.1} parent=87 // pred_region
          %716 = dma.done %s709, 512
        $region100: #{tpu_custom_call.1} parent=87 // pred_fallthru
          _
        %s717 = sand.u32 %s57, 1
        %s718 = scalar_lea.sflag [#allocation3], %s717
        %s719 = sand.u32 %s57, 1
        %s720 = smul.addr %s719, 8
        %s721 = scalar_lea.vmem [#allocation2], %s720
        %p722 = pneg %p70
        %p723 = pneg %p67
        %p724 = scmp.lt.s32.totalorder %s42, 1
        %s725 = scalar_select %p724, %s42, 1
        %s726 = smul.addr %s725, 4
        %s727 = smul.addr %s726, 8
        %s728 = scalar_lea.vmem %s1, %s727
        %p729 = pneg %p96
        %p730 = pneg %p93
        %p731 = scmp.lt.s32.totalorder %s42, 1
        %s732 = scalar_select %p731, %s42, 1
        %s733 = scalar_lea.vmem %s2, %s732
        %p734 = pneg %p122
        %p735 = pneg %p119
        %p736 = scmp.lt.s32.totalorder %s42, 1
        %s737 = scalar_select %p736, %s42, 1
        %s738 = smul.addr %s737, 4
        %s739 = smul.addr %s738, 8
        %s740 = scalar_lea.vmem %s3, %s739
        %p741 = pneg %p148
        %p742 = pneg %p145
        %p743 = scmp.lt.s32.totalorder %s42, 1
        %s744 = scalar_select %p743, %s42, 1
        %s745 = scalar_lea.vmem %s4, %s744
        %p746 = pneg %p174
        %p747 = pneg %p171
        %p748 = scmp.lt.s32.totalorder %s42, 1
        %s749 = scalar_select %p748, %s42, 1
        %s750 = smul.addr %s749, 4
        %s751 = smul.addr %s750, 8
        %s752 = scalar_lea.vmem %s5, %s751
        %p753 = pneg %p200
        %p754 = pneg %p197
        %p755 = scmp.lt.s32.totalorder %s42, 1
        %s756 = scalar_select %p755, %s42, 1
        %s757 = scalar_lea.vmem %s6, %s756
        %p758 = pneg %p226
        %p759 = pneg %p223
        %s760 = sand.u32 %s37, 1
        %s761 = scalar_lea.sflag [#allocation6], %s760
        %s762 = sand.u32 %s239, 1
        %s763 = smul.addr %s762, 32
        %s764 = scalar_lea.vmem [#allocation5], %s763
        %p765 = pneg %p252
        %p766 = pneg %p249
        %p767 = scmp.lt.s32.totalorder %s42, 1
        %s768 = scalar_select %p767, %s42, 1
        %s769 = scalar_lea.vmem %s8, %s768
        %p770 = pneg %p278
        %p771 = pneg %p275
        %p772 = scmp.lt.s32.totalorder %s42, 1
        %s773 = scalar_select %p772, %s42, 1
        %s774 = scalar_lea.vmem %s9, %s773
        %p775 = pneg %p304
        %p776 = pneg %p301
        %p777 = scmp.lt.s32.totalorder %s42, 1
        %s778 = scalar_select %p777, %s42, 1
        %s779 = scalar_lea.vmem %s10, %s778
        %p780 = pneg %p330
        %p781 = pneg %p327
        %s782 = sand.u32 %s37, 1
        %s783 = scalar_lea.sflag [#allocation6], %s782
        %s784 = sand.u32 %s343, 1
        %s785 = smul.addr %s784, 32
        %s786 = scalar_lea.vmem [#allocation7], %s785
        %p787 = pneg %p356
        %p788 = pneg %p353
        %p789 = scmp.lt.s32.totalorder %s42, 1
        %s790 = scalar_select %p789, %s42, 1
        %s791 = scalar_lea.vmem %s12, %s790
        %p792 = pneg %p382
        %p793 = pneg %p379
        %p794 = scmp.lt.s32.totalorder %s42, 1
        %s795 = scalar_select %p794, %s42, 1
        %s796 = smul.addr %s795, 8
        %s797 = smul.addr %s796, 8
        %s798 = scalar_lea.vmem %s13, %s797
        %p799 = pneg %p408
        %p800 = pneg %p405
        %p801 = scmp.lt.s32.totalorder %s42, 1
        %s802 = scalar_select %p801, %s42, 1
        %s803 = scalar_lea.vmem %s14, %s802
        %p804 = pneg %p434
        %p805 = pneg %p431
        %p806 = scmp.lt.s32.totalorder %s42, 1
        %s807 = scalar_select %p806, %s42, 1
        %s808 = scalar_lea.vmem %s15, %s807
        %p809 = pneg %p460
        %p810 = pneg %p457
        %p811 = scmp.lt.s32.totalorder %s42, 1
        %s812 = scalar_select %p811, %s42, 1
        %s813 = scalar_lea.vmem %s16, %s812
        %p814 = pneg %p486
        %p815 = pneg %p483
        %p816 = pneg %p512
        %p817 = pneg %p509
        %s818 = sand.u32 %s499, 1
        %s819 = scalar_lea.sflag [#allocation4], %s818
        %s820 = sand.u32 %s499, 1
        %s821 = smul.addr %s820, 8
        %s822 = scalar_lea.vmem [#allocation8], %s821
        %p823 = scmp.lt.s32.totalorder %s42, 1
        %s824 = scalar_select %p823, %s42, 1
        %s825 = smul.addr %s824, 4
        %s826 = smul.addr %s825, 8
        %s827 = scalar_lea.vmem %s1, %s826
        %p828 = scmp.lt.s32.totalorder %s42, 1
        %s829 = scalar_select %p828, %s42, 1
        %s830 = scalar_lea.vmem %s2, %s829
        %p831 = scmp.lt.s32.totalorder %s42, 1
        %s832 = scalar_select %p831, %s42, 1
        %s833 = smul.addr %s832, 4
        %s834 = smul.addr %s833, 8
        %s835 = scalar_lea.vmem %s3, %s834
        %p836 = scmp.lt.s32.totalorder %s42, 1
        %s837 = scalar_select %p836, %s42, 1
        %s838 = scalar_lea.vmem %s4, %s837
        %p839 = scmp.lt.s32.totalorder %s42, 1
        %s840 = scalar_select %p839, %s42, 1
        %s841 = smul.addr %s840, 4
        %s842 = smul.addr %s841, 8
        %s843 = scalar_lea.vmem %s5, %s842
        %p844 = scmp.lt.s32.totalorder %s42, 1
        %s845 = scalar_select %p844, %s42, 1
        %s846 = scalar_lea.vmem %s6, %s845
        %p847 = scmp.lt.s32.totalorder %s42, 1
        %s848 = scalar_select %p847, %s42, 1
        %s849 = scalar_lea.vmem %s8, %s848
        %p850 = scmp.lt.s32.totalorder %s42, 1
        %s851 = scalar_select %p850, %s42, 1
        %s852 = scalar_lea.vmem %s9, %s851
        %p853 = scmp.lt.s32.totalorder %s42, 1
        %s854 = scalar_select %p853, %s42, 1
        %s855 = scalar_lea.vmem %s10, %s854
        %p856 = scmp.lt.s32.totalorder %s42, 1
        %s857 = scalar_select %p856, %s42, 1
        %s858 = scalar_lea.vmem %s12, %s857
        %p859 = scmp.lt.s32.totalorder %s42, 1
        %s860 = scalar_select %p859, %s42, 1
        %s861 = smul.addr %s860, 8
        %s862 = smul.addr %s861, 8
        %s863 = scalar_lea.vmem %s13, %s862
        %p864 = scmp.lt.s32.totalorder %s42, 1
        %s865 = scalar_select %p864, %s42, 1
        %s866 = scalar_lea.vmem %s14, %s865
        %p867 = scmp.lt.s32.totalorder %s42, 1
        %s868 = scalar_select %p867, %s42, 1
        %s869 = scalar_lea.vmem %s15, %s868
        %p870 = scmp.lt.s32.totalorder %s42, 1
        %s871 = scalar_select %p870, %s42, 1
        %s872 = scalar_lea.vmem %s16, %s871
        %p873 = scmp.eq.s32.totalorder %s42, 0
        // Predicated region
        $region101: #{tpu_custom_call.1} parent=87 // pred_check
          %p874 = pneg %p873
        $region102: #{tpu_custom_call.1} parent=87 // pred_check_branch
          %876 = sbr.rel (%p874) target = $region104
        $region103: #{tpu_custom_call.1} parent=87 // pred_region
          %v877 = vld [vmem:[%s694] sm:$0xff]
          %vm878 = vcmask 261120
          %879 = vst.msk [vmem:[%s822] sm:$0xff] %vm878, %v877
        $region104: #{tpu_custom_call.1} parent=87 // pred_fallthru
          _
        %v880 = vld [vmem:[%s822] sm:$0xff]
        %v881 = vld [vmem:[%s827] sm:$0xff]
        %v882 = vld [vmem:[%s827 + $0x8] sm:$0xff]
        %v883 = vld [vmem:[%s827 + $0x10] sm:$0xff]
        %v884 = vld [vmem:[%s827 + $0x18] sm:$0xff]
        %v885 = vld [vmem:[%s830] sm:$0x1]
        %v887 = vlaneseq
        %v888 = vshrl.u32 %v887, 7
        %v889 = vsub.s32 0, %v888
        %v890 = vrot.slane %v885, %v889
        %vm892 = vcmask 261120
        %v894 = vsel %vm892, %v880, 0
        %896 = vmatprep.subr.mxu0 0.0
        %897 = vmatpush1.msra.mxu0 %v881
        %898 = vmatprep.subr.mxu0 0.0
        %899 = vmatpush1.msra.mxu0 %v882
        %900 = vmatprep.subr.mxu0 0.0
        %901 = vmatpush1.msra.mxu0 %v883
        %902 = vmatprep.subr.mxu0 0.0
        %903 = vmatpush1.msra.mxu0 %v884
        %904 = vmatprep.subr.mxu0 0.0
        %905 = vmatpush1.msra.mxu0 0.0
        %906 = vmatprep.subr.mxu0 0.0
        %907 = vmatpush1.msra.mxu0 0.0
        %908 = vmatprep.subr.mxu0 0.0
        %909 = vmatpush1.msra.mxu0 0.0
        %910 = vmatprep.subr.mxu0 0.0
        %911 = vmatpush1.msra.mxu0 0.0
        %912 = vmatprep.subr.mxu0 0.0
        %913 = vmatpush1.msra.mxu0 0.0
        %914 = vmatprep.subr.mxu0 0.0
        %915 = vmatpush1.msra.mxu0 0.0
        %916 = vmatprep.subr.mxu0 0.0
        %917 = vmatpush1.msra.mxu0 0.0
        %918 = vmatprep.subr.mxu0 0.0
        %919 = vmatpush1.msra.mxu0 0.0
        %920 = vmatprep.subr.mxu0 0.0
        %921 = vmatpush1.msra.mxu0 0.0
        %922 = vmatprep.subr.mxu0 0.0
        %923 = vmatpush1.msra.mxu0 0.0
        %924 = vmatprep.subr.mxu0 0.0
        %925 = vmatpush1.msra.mxu0 0.0
        %926 = vmatprep.subr.mxu0 0.0
        %927 = vmatpush1.msra.mxu0 0.0
        %928 = vmatprep.subr.mxu0 0.0
        %929 = vmatpush1.msra.mxu0 0.0
        %930 = vmatprep.subr.mxu0 0.0
        %931 = vmatpush1.msra.mxu0 0.0
        %932 = vmatprep.subr.mxu0 0.0
        %933 = vmatpush1.msra.mxu0 0.0
        %934 = vmatprep.subr.mxu0 0.0
        %935 = vmatpush1.msra.mxu0 0.0
        %936 = vmatprep.subr.mxu0 0.0
        %937 = vmatpush1.msra.mxu0 0.0
        %938 = vmatprep.subr.mxu0 0.0
        %939 = vmatpush1.msra.mxu0 0.0
        %940 = vmatprep.subr.mxu0 0.0
        %941 = vmatpush1.msra.mxu0 0.0
        %942 = vmatprep.subr.mxu0 0.0
        %943 = vmatpush1.msra.mxu0 0.0
        %944 = vmatprep.subr.mxu0 0.0
        %945 = vmatpush1.msra.mxu0 0.0
        %946 = vmatprep.subr.mxu0 0.0
        %947 = vmatpush1.msra.mxu0 0.0
        %948 = vmatprep.subr.mxu0 0.0
        %949 = vmatpush1.msra.mxu0 0.0
        %950 = vmatprep.subr.mxu0 0.0
        %951 = vmatpush1.msra.mxu0 0.0
        %952 = vmatprep.subr.mxu0 0.0
        %953 = vmatpush1.msra.mxu0 0.0
        %954 = vmatprep.subr.mxu0 0.0
        %955 = vmatpush1.msra.mxu0 0.0
        %956 = vmatprep.subr.mxu0 0.0
        %957 = vmatpush1.msra.mxu0 0.0
        %958 = vmatprep.subr.mxu0 0.0
        %959 = vmatpush1.msra.mxu0 0.0
        %960 = vmatprep.mubr.f32.mxu0 0.0
        %961 = vmatmul.mubr.f32.gmra.mrb[0].mxu0 %v894
        %v962 = vpop.f32.mrb[0].mxu0
        %v963 = vadd.f32 %v890, %v962
        %v964 = vpop.f32.mrb[0].mxu0
        %965 = vdwg.mxu0
        %v966 = vld [vmem:[%s835] sm:$0xff]
        %v967 = vld [vmem:[%s835 + $0x8] sm:$0xff]
        %v968 = vld [vmem:[%s835 + $0x10] sm:$0xff]
        %v969 = vld [vmem:[%s835 + $0x18] sm:$0xff]
        %v970 = vld [vmem:[%s838] sm:$0x1]
        %v972 = vlaneseq
        %v973 = vshrl.u32 %v972, 7
        %v974 = vsub.s32 0, %v973
        %v975 = vrot.slane %v970, %v974
        %977 = vmatprep.subr.mxu0 0.0
        %978 = vmatpush1.msra.mxu0 %v966
        %979 = vmatprep.subr.mxu0 0.0
        %980 = vmatpush1.msra.mxu0 %v967
        %981 = vmatprep.subr.mxu0 0.0
        %982 = vmatpush1.msra.mxu0 %v968
        %983 = vmatprep.subr.mxu0 0.0
        %984 = vmatpush1.msra.mxu0 %v969
        %985 = vmatprep.subr.mxu0 0.0
        %986 = vmatpush1.msra.mxu0 0.0
        %987 = vmatprep.subr.mxu0 0.0
        %988 = vmatpush1.msra.mxu0 0.0
        %989 = vmatprep.subr.mxu0 0.0
        %990 = vmatpush1.msra.mxu0 0.0
        %991 = vmatprep.subr.mxu0 0.0
        %992 = vmatpush1.msra.mxu0 0.0
        %993 = vmatprep.subr.mxu0 0.0
        %994 = vmatpush1.msra.mxu0 0.0
        %995 = vmatprep.subr.mxu0 0.0
        %996 = vmatpush1.msra.mxu0 0.0
        %997 = vmatprep.subr.mxu0 0.0
        %998 = vmatpush1.msra.mxu0 0.0
        %999 = vmatprep.subr.mxu0 0.0
        %1000 = vmatpush1.msra.mxu0 0.0
        %1001 = vmatprep.subr.mxu0 0.0
        %1002 = vmatpush1.msra.mxu0 0.0
        %1003 = vmatprep.subr.mxu0 0.0
        %1004 = vmatpush1.msra.mxu0 0.0
        %1005 = vmatprep.subr.mxu0 0.0
        %1006 = vmatpush1.msra.mxu0 0.0
        %1007 = vmatprep.subr.mxu0 0.0
        %1008 = vmatpush1.msra.mxu0 0.0
        %1009 = vmatprep.subr.mxu0 0.0
        %1010 = vmatpush1.msra.mxu0 0.0
        %1011 = vmatprep.subr.mxu0 0.0
        %1012 = vmatpush1.msra.mxu0 0.0
        %1013 = vmatprep.subr.mxu0 0.0
        %1014 = vmatpush1.msra.mxu0 0.0
        %1015 = vmatprep.subr.mxu0 0.0
        %1016 = vmatpush1.msra.mxu0 0.0
        %1017 = vmatprep.subr.mxu0 0.0
        %1018 = vmatpush1.msra.mxu0 0.0
        %1019 = vmatprep.subr.mxu0 0.0
        %1020 = vmatpush1.msra.mxu0 0.0
        %1021 = vmatprep.subr.mxu0 0.0
        %1022 = vmatpush1.msra.mxu0 0.0
        %1023 = vmatprep.subr.mxu0 0.0
        %1024 = vmatpush1.msra.mxu0 0.0
        %1025 = vmatprep.subr.mxu0 0.0
        %1026 = vmatpush1.msra.mxu0 0.0
        %1027 = vmatprep.subr.mxu0 0.0
        %1028 = vmatpush1.msra.mxu0 0.0
        %1029 = vmatprep.subr.mxu0 0.0
        %1030 = vmatpush1.msra.mxu0 0.0
        %1031 = vmatprep.subr.mxu0 0.0
        %1032 = vmatpush1.msra.mxu0 0.0
        %1033 = vmatprep.subr.mxu0 0.0
        %1034 = vmatpush1.msra.mxu0 0.0
        %1035 = vmatprep.subr.mxu0 0.0
        %1036 = vmatpush1.msra.mxu0 0.0
        %1037 = vmatprep.subr.mxu0 0.0
        %1038 = vmatpush1.msra.mxu0 0.0
        %1039 = vmatprep.subr.mxu0 0.0
        %1040 = vmatpush1.msra.mxu0 0.0
        %1041 = vmatprep.mubr.f32.mxu0 0.0
        %1042 = vmatmul.mubr.f32.gmra.mrb[0].mxu0 %v894
        %v1043 = vpop.f32.mrb[0].mxu0
        %v1044 = vadd.f32 %v975, %v1043
        %v1045 = vpop.f32.mrb[0].mxu0
        %1046 = vdwg.mxu0
        %v1047 = vld [vmem:[%s843] sm:$0xff]
        %v1048 = vld [vmem:[%s843 + $0x8] sm:$0xff]
        %v1049 = vld [vmem:[%s843 + $0x10] sm:$0xff]
        %v1050 = vld [vmem:[%s843 + $0x18] sm:$0xff]
        %v1051 = vld [vmem:[%s846] sm:$0x1]
        %v1053 = vlaneseq
        %v1054 = vshrl.u32 %v1053, 7
        %v1055 = vsub.s32 0, %v1054
        %v1056 = vrot.slane %v1051, %v1055
        %1058 = vmatprep.subr.mxu0 0.0
        %1059 = vmatpush1.msra.mxu0 %v1047
        %1060 = vmatprep.subr.mxu0 0.0
        %1061 = vmatpush1.msra.mxu0 %v1048
        %1062 = vmatprep.subr.mxu0 0.0
        %1063 = vmatpush1.msra.mxu0 %v1049
        %1064 = vmatprep.subr.mxu0 0.0
        %1065 = vmatpush1.msra.mxu0 %v1050
        %1066 = vmatprep.subr.mxu0 0.0
        %1067 = vmatpush1.msra.mxu0 0.0
        %1068 = vmatprep.subr.mxu0 0.0
        %1069 = vmatpush1.msra.mxu0 0.0
        %1070 = vmatprep.subr.mxu0 0.0
        %1071 = vmatpush1.msra.mxu0 0.0
        %1072 = vmatprep.subr.mxu0 0.0
        %1073 = vmatpush1.msra.mxu0 0.0
        %1074 = vmatprep.subr.mxu0 0.0
        %1075 = vmatpush1.msra.mxu0 0.0
        %1076 = vmatprep.subr.mxu0 0.0
        %1077 = vmatpush1.msra.mxu0 0.0
        %1078 = vmatprep.subr.mxu0 0.0
        %1079 = vmatpush1.msra.mxu0 0.0
        %1080 = vmatprep.subr.mxu0 0.0
        %1081 = vmatpush1.msra.mxu0 0.0
        %1082 = vmatprep.subr.mxu0 0.0
        %1083 = vmatpush1.msra.mxu0 0.0
        %1084 = vmatprep.subr.mxu0 0.0
        %1085 = vmatpush1.msra.mxu0 0.0
        %1086 = vmatprep.subr.mxu0 0.0
        %1087 = vmatpush1.msra.mxu0 0.0
        %1088 = vmatprep.subr.mxu0 0.0
        %1089 = vmatpush1.msra.mxu0 0.0
        %1090 = vmatprep.subr.mxu0 0.0
        %1091 = vmatpush1.msra.mxu0 0.0
        %1092 = vmatprep.subr.mxu0 0.0
        %1093 = vmatpush1.msra.mxu0 0.0
        %1094 = vmatprep.subr.mxu0 0.0
        %1095 = vmatpush1.msra.mxu0 0.0
        %1096 = vmatprep.subr.mxu0 0.0
        %1097 = vmatpush1.msra.mxu0 0.0
        %1098 = vmatprep.subr.mxu0 0.0
        %1099 = vmatpush1.msra.mxu0 0.0
        %1100 = vmatprep.subr.mxu0 0.0
        %1101 = vmatpush1.msra.mxu0 0.0
        %1102 = vmatprep.subr.mxu0 0.0
        %1103 = vmatpush1.msra.mxu0 0.0
        %1104 = vmatprep.subr.mxu0 0.0
        %1105 = vmatpush1.msra.mxu0 0.0
        %1106 = vmatprep.subr.mxu0 0.0
        %1107 = vmatpush1.msra.mxu0 0.0
        %1108 = vmatprep.subr.mxu0 0.0
        %1109 = vmatpush1.msra.mxu0 0.0
        %1110 = vmatprep.subr.mxu0 0.0
        %1111 = vmatpush1.msra.mxu0 0.0
        %1112 = vmatprep.subr.mxu0 0.0
        %1113 = vmatpush1.msra.mxu0 0.0
        %1114 = vmatprep.subr.mxu0 0.0
        %1115 = vmatpush1.msra.mxu0 0.0
        %1116 = vmatprep.subr.mxu0 0.0
        %1117 = vmatpush1.msra.mxu0 0.0
        %1118 = vmatprep.subr.mxu0 0.0
        %1119 = vmatpush1.msra.mxu0 0.0
        %1120 = vmatprep.subr.mxu0 0.0
        %1121 = vmatpush1.msra.mxu0 0.0
        %1122 = vmatprep.mubr.f32.mxu0 0.0
        %1123 = vmatmul.mubr.f32.gmra.mrb[0].mxu0 %v894
        %v1124 = vpop.f32.mrb[0].mxu0
        %v1125 = vadd.f32 %v1056, %v1124
        %v1126 = vpop.f32.mrb[0].mxu0
        %1127 = vdwg.mxu0
        %vm1128 = vcmask 64512
        %v1130 = vsel %vm1128, %v963, 0
        %v1133 = vsel %vm1128, %v1044, 0
        %1135 = vmatprep.subr.mxu0 0.0
        %1136 = vmatpush1.xpose.msra.mxu0 %v1133
        %1137 = vmatprep.subr.mxu0 0.0
        %1138 = vmatpush1.xpose.msra.mxu0 0.0
        %1139 = vmatprep.subr.mxu0 0.0
        %1140 = vmatpush1.xpose.msra.mxu0 0.0
        %1141 = vmatprep.subr.mxu0 0.0
        %1142 = vmatpush1.xpose.msra.mxu0 0.0
        %1143 = vmatprep.subr.mxu0 0.0
        %1144 = vmatpush1.xpose.msra.mxu0 0.0
        %1145 = vmatprep.subr.mxu0 0.0
        %1146 = vmatpush1.xpose.msra.mxu0 0.0
        %1147 = vmatprep.subr.mxu0 0.0
        %1148 = vmatpush1.xpose.msra.mxu0 0.0
        %1149 = vmatprep.subr.mxu0 0.0
        %1150 = vmatpush1.xpose.msra.mxu0 0.0
        %1151 = vmatprep.subr.mxu0 0.0
        %1152 = vmatpush1.xpose.msra.mxu0 0.0
        %1153 = vmatprep.subr.mxu0 0.0
        %1154 = vmatpush1.xpose.msra.mxu0 0.0
        %1155 = vmatprep.subr.mxu0 0.0
        %1156 = vmatpush1.xpose.msra.mxu0 0.0
        %1157 = vmatprep.subr.mxu0 0.0
        %1158 = vmatpush1.xpose.msra.mxu0 0.0
        %1159 = vmatprep.subr.mxu0 0.0
        %1160 = vmatpush1.xpose.msra.mxu0 0.0
        %1161 = vmatprep.subr.mxu0 0.0
        %1162 = vmatpush1.xpose.msra.mxu0 0.0
        %1163 = vmatprep.subr.mxu0 0.0
        %1164 = vmatpush1.xpose.msra.mxu0 0.0
        %1165 = vmatprep.subr.mxu0 0.0
        %1166 = vmatpush1.xpose.msra.mxu0 0.0
        %1167 = vmatprep.subr.mxu0 0.0
        %1168 = vmatpush1.xpose.msra.mxu0 0.0
        %1169 = vmatprep.subr.mxu0 0.0
        %1170 = vmatpush1.xpose.msra.mxu0 0.0
        %1171 = vmatprep.subr.mxu0 0.0
        %1172 = vmatpush1.xpose.msra.mxu0 0.0
        %1173 = vmatprep.subr.mxu0 0.0
        %1174 = vmatpush1.xpose.msra.mxu0 0.0
        %1175 = vmatprep.subr.mxu0 0.0
        %1176 = vmatpush1.xpose.msra.mxu0 0.0
        %1177 = vmatprep.subr.mxu0 0.0
        %1178 = vmatpush1.xpose.msra.mxu0 0.0
        %1179 = vmatprep.subr.mxu0 0.0
        %1180 = vmatpush1.xpose.msra.mxu0 0.0
        %1181 = vmatprep.subr.mxu0 0.0
        %1182 = vmatpush1.xpose.msra.mxu0 0.0
        %1183 = vmatprep.subr.mxu0 0.0
        %1184 = vmatpush1.xpose.msra.mxu0 0.0
        %1185 = vmatprep.subr.mxu0 0.0
        %1186 = vmatpush1.xpose.msra.mxu0 0.0
        %1187 = vmatprep.subr.mxu0 0.0
        %1188 = vmatpush1.xpose.msra.mxu0 0.0
        %1189 = vmatprep.subr.mxu0 0.0
        %1190 = vmatpush1.xpose.msra.mxu0 0.0
        %1191 = vmatprep.subr.mxu0 0.0
        %1192 = vmatpush1.xpose.msra.mxu0 0.0
        %1193 = vmatprep.subr.mxu0 0.0
        %1194 = vmatpush1.xpose.msra.mxu0 0.0
        %1195 = vmatprep.subr.mxu0 0.0
        %1196 = vmatpush1.xpose.msra.mxu0 0.0
        %1197 = vmatprep.subr.mxu0 0.0
        %1198 = vmatpush1.xpose.msra.mxu0 0.0
        %1199 = vmatprep.mubr.f32.mxu0 0.0
        %1200 = vmatmul.mubr.f32.gmra.mrb[0].mxu0 %v1130
        %v1201 = vpop.f32.mrb[0].mxu0
        %v1202 = vadd.f32 0.0, %v1201
        %v1203 = vpop.f32.mrb[0].mxu0
        %1204 = vdwg.mxu0
        %v1205 = vsel %vm1128, %v1202, -inf
        %1206 = vmax.xlane.f32.xlu0 %v1205
        %v1207 = vpop.xlane.xlu0 %1206
        %v1208 = vsub.f32 %v1202, %v1207
        %v1209 = vmul.f32 %v1208, 1.442695
        %v1210 = vpow.pop %v1209
        %v1211 = vsel %vm1128, %v1210, 0.0
        %1212 = vadd.xlane.f32.xlu0 %v1211
        %v1213 = vpop.xlane.xlu0 %1212
        %v1214 = vrcp.pop %v1213
        %v1215 = vmul.f32 %v1210, %v1214
        %v1217 = vsel %vm1128, %v1215, 0
        %1219 = vmatprep.subr.mxu0 0.0
        %1220 = vmatpush1.msra.mxu0 %v1125
        %1221 = vmatprep.subr.mxu0 0.0
        %1222 = vmatpush1.msra.mxu0 0.0
        %1223 = vmatprep.subr.mxu0 0.0
        %1224 = vmatpush1.msra.mxu0 0.0
        %1225 = vmatprep.subr.mxu0 0.0
        %1226 = vmatpush1.msra.mxu0 0.0
        %1227 = vmatprep.subr.mxu0 0.0
        %1228 = vmatpush1.msra.mxu0 0.0
        %1229 = vmatprep.subr.mxu0 0.0
        %1230 = vmatpush1.msra.mxu0 0.0
        %1231 = vmatprep.subr.mxu0 0.0
        %1232 = vmatpush1.msra.mxu0 0.0
        %1233 = vmatprep.subr.mxu0 0.0
        %1234 = vmatpush1.msra.mxu0 0.0
        %1235 = vmatprep.subr.mxu0 0.0
        %1236 = vmatpush1.msra.mxu0 0.0
        %1237 = vmatprep.subr.mxu0 0.0
        %1238 = vmatpush1.msra.mxu0 0.0
        %1239 = vmatprep.subr.mxu0 0.0
        %1240 = vmatpush1.msra.mxu0 0.0
        %1241 = vmatprep.subr.mxu0 0.0
        %1242 = vmatpush1.msra.mxu0 0.0
        %1243 = vmatprep.subr.mxu0 0.0
        %1244 = vmatpush1.msra.mxu0 0.0
        %1245 = vmatprep.subr.mxu0 0.0
        %1246 = vmatpush1.msra.mxu0 0.0
        %1247 = vmatprep.subr.mxu0 0.0
        %1248 = vmatpush1.msra.mxu0 0.0
        %1249 = vmatprep.subr.mxu0 0.0
        %1250 = vmatpush1.msra.mxu0 0.0
        %1251 = vmatprep.subr.mxu0 0.0
        %1252 = vmatpush1.msra.mxu0 0.0
        %1253 = vmatprep.subr.mxu0 0.0
        %1254 = vmatpush1.msra.mxu0 0.0
        %1255 = vmatprep.subr.mxu0 0.0
        %1256 = vmatpush1.msra.mxu0 0.0
        %1257 = vmatprep.subr.mxu0 0.0
        %1258 = vmatpush1.msra.mxu0 0.0
        %1259 = vmatprep.subr.mxu0 0.0
        %1260 = vmatpush1.msra.mxu0 0.0
        %1261 = vmatprep.subr.mxu0 0.0
        %1262 = vmatpush1.msra.mxu0 0.0
        %1263 = vmatprep.subr.mxu0 0.0
        %1264 = vmatpush1.msra.mxu0 0.0
        %1265 = vmatprep.subr.mxu0 0.0
        %1266 = vmatpush1.msra.mxu0 0.0
        %1267 = vmatprep.subr.mxu0 0.0
        %1268 = vmatpush1.msra.mxu0 0.0
        %1269 = vmatprep.subr.mxu0 0.0
        %1270 = vmatpush1.msra.mxu0 0.0
        %1271 = vmatprep.subr.mxu0 0.0
        %1272 = vmatpush1.msra.mxu0 0.0
        %1273 = vmatprep.subr.mxu0 0.0
        %1274 = vmatpush1.msra.mxu0 0.0
        %1275 = vmatprep.subr.mxu0 0.0
        %1276 = vmatpush1.msra.mxu0 0.0
        %1277 = vmatprep.subr.mxu0 0.0
        %1278 = vmatpush1.msra.mxu0 0.0
        %1279 = vmatprep.subr.mxu0 0.0
        %1280 = vmatpush1.msra.mxu0 0.0
        %1281 = vmatprep.subr.mxu0 0.0
        %1282 = vmatpush1.msra.mxu0 0.0
        %1283 = vmatprep.mubr.f32.mxu0 0.0
        %1284 = vmatmul.mubr.f32.gmra.mrb[0].mxu0 %v1217
        %v1285 = vpop.f32.mrb[0].mxu0
        %v1286 = vadd.f32 0.0, %v1285
        %v1287 = vpop.f32.mrb[0].mxu0
        %1288 = vdwg.mxu0
        %1289 = vrot.lane.b32.xlu0 %v963, 120
        %v1290 = vpop.permute.xlu0 %1289
        %1291 = vrot.lane.b32.xlu0 %v1044, 120
        %v1292 = vpop.permute.xlu0 %1291
        %v1293 = vsel %vm1128, %v1290, 0
        %v1295 = vsel %vm1128, %v1292, 0
        %1297 = vmatprep.subr.mxu0 0.0
        %1298 = vmatpush1.xpose.msra.mxu0 %v1295
        %1299 = vmatprep.subr.mxu0 0.0
        %1300 = vmatpush1.xpose.msra.mxu0 0.0
        %1301 = vmatprep.subr.mxu0 0.0
        %1302 = vmatpush1.xpose.msra.mxu0 0.0
        %1303 = vmatprep.subr.mxu0 0.0
        %1304 = vmatpush1.xpose.msra.mxu0 0.0
        %1305 = vmatprep.subr.mxu0 0.0
        %1306 = vmatpush1.xpose.msra.mxu0 0.0
        %1307 = vmatprep.subr.mxu0 0.0
        %1308 = vmatpush1.xpose.msra.mxu0 0.0
        %1309 = vmatprep.subr.mxu0 0.0
        %1310 = vmatpush1.xpose.msra.mxu0 0.0
        %1311 = vmatprep.subr.mxu0 0.0
        %1312 = vmatpush1.xpose.msra.mxu0 0.0
        %1313 = vmatprep.subr.mxu0 0.0
        %1314 = vmatpush1.xpose.msra.mxu0 0.0
        %1315 = vmatprep.subr.mxu0 0.0
        %1316 = vmatpush1.xpose.msra.mxu0 0.0
        %1317 = vmatprep.subr.mxu0 0.0
        %1318 = vmatpush1.xpose.msra.mxu0 0.0
        %1319 = vmatprep.subr.mxu0 0.0
        %1320 = vmatpush1.xpose.msra.mxu0 0.0
        %1321 = vmatprep.subr.mxu0 0.0
        %1322 = vmatpush1.xpose.msra.mxu0 0.0
        %1323 = vmatprep.subr.mxu0 0.0
        %1324 = vmatpush1.xpose.msra.mxu0 0.0
        %1325 = vmatprep.subr.mxu0 0.0
        %1326 = vmatpush1.xpose.msra.mxu0 0.0
        %1327 = vmatprep.subr.mxu0 0.0
        %1328 = vmatpush1.xpose.msra.mxu0 0.0
        %1329 = vmatprep.subr.mxu0 0.0
        %1330 = vmatpush1.xpose.msra.mxu0 0.0
        %1331 = vmatprep.subr.mxu0 0.0
        %1332 = vmatpush1.xpose.msra.mxu0 0.0
        %1333 = vmatprep.subr.mxu0 0.0
        %1334 = vmatpush1.xpose.msra.mxu0 0.0
        %1335 = vmatprep.subr.mxu0 0.0
        %1336 = vmatpush1.xpose.msra.mxu0 0.0
        %1337 = vmatprep.subr.mxu0 0.0
        %1338 = vmatpush1.xpose.msra.mxu0 0.0
        %1339 = vmatprep.subr.mxu0 0.0
        %1340 = vmatpush1.xpose.msra.mxu0 0.0
        %1341 = vmatprep.subr.mxu0 0.0
        %1342 = vmatpush1.xpose.msra.mxu0 0.0
        %1343 = vmatprep.subr.mxu0 0.0
        %1344 = vmatpush1.xpose.msra.mxu0 0.0
        %1345 = vmatprep.subr.mxu0 0.0
        %1346 = vmatpush1.xpose.msra.mxu0 0.0
        %1347 = vmatprep.subr.mxu0 0.0
        %1348 = vmatpush1.xpose.msra.mxu0 0.0
        %1349 = vmatprep.subr.mxu0 0.0
        %1350 = vmatpush1.xpose.msra.mxu0 0.0
        %1351 = vmatprep.subr.mxu0 0.0
        %1352 = vmatpush1.xpose.msra.mxu0 0.0
        %1353 = vmatprep.subr.mxu0 0.0
        %1354 = vmatpush1.xpose.msra.mxu0 0.0
        %1355 = vmatprep.subr.mxu0 0.0
        %1356 = vmatpush1.xpose.msra.mxu0 0.0
        %1357 = vmatprep.subr.mxu0 0.0
        %1358 = vmatpush1.xpose.msra.mxu0 0.0
        %1359 = vmatprep.subr.mxu0 0.0
        %1360 = vmatpush1.xpose.msra.mxu0 0.0
        %1361 = vmatprep.mubr.f32.mxu0 0.0
        %1362 = vmatmul.mubr.f32.gmra.mrb[0].mxu0 %v1293
        %v1363 = vpop.f32.mrb[0].mxu0
        %v1364 = vadd.f32 0.0, %v1363
        %v1365 = vpop.f32.mrb[0].mxu0
        %1366 = vdwg.mxu0
        %v1367 = vsel %vm1128, %v1364, -inf
        %1368 = vmax.xlane.f32.xlu0 %v1367
        %v1369 = vpop.xlane.xlu0 %1368
        %v1370 = vsub.f32 %v1364, %v1369
        %v1371 = vmul.f32 %v1370, 1.442695
        %v1372 = vpow.pop %v1371
        %v1373 = vsel %vm1128, %v1372, 0.0
        %1374 = vadd.xlane.f32.xlu0 %v1373
        %v1375 = vpop.xlane.xlu0 %1374
        %v1376 = vrcp.pop %v1375
        %v1377 = vmul.f32 %v1372, %v1376
        %1379 = vrot.lane.b32.xlu0 %v1125, 120
        %v1380 = vpop.permute.xlu0 %1379
        %v1383 = vsel %vm1128, %v1377, 0
        %1385 = vmatprep.subr.mxu0 0.0
        %1386 = vmatpush1.msra.mxu0 %v1380
        %1387 = vmatprep.subr.mxu0 0.0
        %1388 = vmatpush1.msra.mxu0 0.0
        %1389 = vmatprep.subr.mxu0 0.0
        %1390 = vmatpush1.msra.mxu0 0.0
        %1391 = vmatprep.subr.mxu0 0.0
        %1392 = vmatpush1.msra.mxu0 0.0
        %1393 = vmatprep.subr.mxu0 0.0
        %1394 = vmatpush1.msra.mxu0 0.0
        %1395 = vmatprep.subr.mxu0 0.0
        %1396 = vmatpush1.msra.mxu0 0.0
        %1397 = vmatprep.subr.mxu0 0.0
        %1398 = vmatpush1.msra.mxu0 0.0
        %1399 = vmatprep.subr.mxu0 0.0
        %1400 = vmatpush1.msra.mxu0 0.0
        %1401 = vmatprep.subr.mxu0 0.0
        %1402 = vmatpush1.msra.mxu0 0.0
        %1403 = vmatprep.subr.mxu0 0.0
        %1404 = vmatpush1.msra.mxu0 0.0
        %1405 = vmatprep.subr.mxu0 0.0
        %1406 = vmatpush1.msra.mxu0 0.0
        %1407 = vmatprep.subr.mxu0 0.0
        %1408 = vmatpush1.msra.mxu0 0.0
        %1409 = vmatprep.subr.mxu0 0.0
        %1410 = vmatpush1.msra.mxu0 0.0
        %1411 = vmatprep.subr.mxu0 0.0
        %1412 = vmatpush1.msra.mxu0 0.0
        %1413 = vmatprep.subr.mxu0 0.0
        %1414 = vmatpush1.msra.mxu0 0.0
        %1415 = vmatprep.subr.mxu0 0.0
        %1416 = vmatpush1.msra.mxu0 0.0
        %1417 = vmatprep.subr.mxu0 0.0
        %1418 = vmatpush1.msra.mxu0 0.0
        %1419 = vmatprep.subr.mxu0 0.0
        %1420 = vmatpush1.msra.mxu0 0.0
        %1421 = vmatprep.subr.mxu0 0.0
        %1422 = vmatpush1.msra.mxu0 0.0
        %1423 = vmatprep.subr.mxu0 0.0
        %1424 = vmatpush1.msra.mxu0 0.0
        %1425 = vmatprep.subr.mxu0 0.0
        %1426 = vmatpush1.msra.mxu0 0.0
        %1427 = vmatprep.subr.mxu0 0.0
        %1428 = vmatpush1.msra.mxu0 0.0
        %1429 = vmatprep.subr.mxu0 0.0
        %1430 = vmatpush1.msra.mxu0 0.0
        %1431 = vmatprep.subr.mxu0 0.0
        %1432 = vmatpush1.msra.mxu0 0.0
        %1433 = vmatprep.subr.mxu0 0.0
        %1434 = vmatpush1.msra.mxu0 0.0
        %1435 = vmatprep.subr.mxu0 0.0
        %1436 = vmatpush1.msra.mxu0 0.0
        %1437 = vmatprep.subr.mxu0 0.0
        %1438 = vmatpush1.msra.mxu0 0.0
        %1439 = vmatprep.subr.mxu0 0.0
        %1440 = vmatpush1.msra.mxu0 0.0
        %1441 = vmatprep.subr.mxu0 0.0
        %1442 = vmatpush1.msra.mxu0 0.0
        %1443 = vmatprep.subr.mxu0 0.0
        %1444 = vmatpush1.msra.mxu0 0.0
        %1445 = vmatprep.subr.mxu0 0.0
        %1446 = vmatpush1.msra.mxu0 0.0
        %1447 = vmatprep.subr.mxu0 0.0
        %1448 = vmatpush1.msra.mxu0 0.0
        %1449 = vmatprep.mubr.f32.mxu0 0.0
        %1450 = vmatmul.mubr.f32.gmra.mrb[0].mxu0 %v1383
        %v1451 = vpop.f32.mrb[0].mxu0
        %v1452 = vadd.f32 0.0, %v1451
        %v1453 = vpop.f32.mrb[0].mxu0
        %1454 = vdwg.mxu0
        %1455 = vrot.lane.b32.xlu0 %v963, 112
        %v1456 = vpop.permute.xlu0 %1455
        %1457 = vrot.lane.b32.xlu0 %v1044, 112
        %v1458 = vpop.permute.xlu0 %1457
        %v1459 = vsel %vm1128, %v1456, 0
        %v1461 = vsel %vm1128, %v1458, 0
        %1463 = vmatprep.subr.mxu0 0.0
        %1464 = vmatpush1.xpose.msra.mxu0 %v1461
        %1465 = vmatprep.subr.mxu0 0.0
        %1466 = vmatpush1.xpose.msra.mxu0 0.0
        %1467 = vmatprep.subr.mxu0 0.0
        %1468 = vmatpush1.xpose.msra.mxu0 0.0
        %1469 = vmatprep.subr.mxu0 0.0
        %1470 = vmatpush1.xpose.msra.mxu0 0.0
        %1471 = vmatprep.subr.mxu0 0.0
        %1472 = vmatpush1.xpose.msra.mxu0 0.0
        %1473 = vmatprep.subr.mxu0 0.0
        %1474 = vmatpush1.xpose.msra.mxu0 0.0
        %1475 = vmatprep.subr.mxu0 0.0
        %1476 = vmatpush1.xpose.msra.mxu0 0.0
        %1477 = vmatprep.subr.mxu0 0.0
        %1478 = vmatpush1.xpose.msra.mxu0 0.0
        %1479 = vmatprep.subr.mxu0 0.0
        %1480 = vmatpush1.xpose.msra.mxu0 0.0
        %1481 = vmatprep.subr.mxu0 0.0
        %1482 = vmatpush1.xpose.msra.mxu0 0.0
        %1483 = vmatprep.subr.mxu0 0.0
        %1484 = vmatpush1.xpose.msra.mxu0 0.0
        %1485 = vmatprep.subr.mxu0 0.0
        %1486 = vmatpush1.xpose.msra.mxu0 0.0
        %1487 = vmatprep.subr.mxu0 0.0
        %1488 = vmatpush1.xpose.msra.mxu0 0.0
        %1489 = vmatprep.subr.mxu0 0.0
        %1490 = vmatpush1.xpose.msra.mxu0 0.0
        %1491 = vmatprep.subr.mxu0 0.0
        %1492 = vmatpush1.xpose.msra.mxu0 0.0
        %1493 = vmatprep.subr.mxu0 0.0
        %1494 = vmatpush1.xpose.msra.mxu0 0.0
        %1495 = vmatprep.subr.mxu0 0.0
        %1496 = vmatpush1.xpose.msra.mxu0 0.0
        %1497 = vmatprep.subr.mxu0 0.0
        %1498 = vmatpush1.xpose.msra.mxu0 0.0
        %1499 = vmatprep.subr.mxu0 0.0
        %1500 = vmatpush1.xpose.msra.mxu0 0.0
        %1501 = vmatprep.subr.mxu0 0.0
        %1502 = vmatpush1.xpose.msra.mxu0 0.0
        %1503 = vmatprep.subr.mxu0 0.0
        %1504 = vmatpush1.xpose.msra.mxu0 0.0
        %1505 = vmatprep.subr.mxu0 0.0
        %1506 = vmatpush1.xpose.msra.mxu0 0.0
        %1507 = vmatprep.subr.mxu0 0.0
        %1508 = vmatpush1.xpose.msra.mxu0 0.0
        %1509 = vmatprep.subr.mxu0 0.0
        %1510 = vmatpush1.xpose.msra.mxu0 0.0
        %1511 = vmatprep.subr.mxu0 0.0
        %1512 = vmatpush1.xpose.msra.mxu0 0.0
        %1513 = vmatprep.subr.mxu0 0.0
        %1514 = vmatpush1.xpose.msra.mxu0 0.0
        %1515 = vmatprep.subr.mxu0 0.0
        %1516 = vmatpush1.xpose.msra.mxu0 0.0
        %1517 = vmatprep.subr.mxu0 0.0
        %1518 = vmatpush1.xpose.msra.mxu0 0.0
        %1519 = vmatprep.subr.mxu0 0.0
        %1520 = vmatpush1.xpose.msra.mxu0 0.0
        %1521 = vmatprep.subr.mxu0 0.0
        %1522 = vmatpush1.xpose.msra.mxu0 0.0
        %1523 = vmatprep.subr.mxu0 0.0
        %1524 = vmatpush1.xpose.msra.mxu0 0.0
        %1525 = vmatprep.subr.mxu0 0.0
        %1526 = vmatpush1.xpose.msra.mxu0 0.0
        %1527 = vmatprep.mubr.f32.mxu0 0.0
        %1528 = vmatmul.mubr.f32.gmra.mrb[0].mxu0 %v1459
        %v1529 = vpop.f32.mrb[0].mxu0
        %v1530 = vadd.f32 0.0, %v1529
        %v1531 = vpop.f32.mrb[0].mxu0
        %1532 = vdwg.mxu0
        %v1533 = vsel %vm1128, %v1530, -inf
        %1534 = vmax.xlane.f32.xlu0 %v1533
        %v1535 = vpop.xlane.xlu0 %1534
        %v1536 = vsub.f32 %v1530, %v1535
        %v1537 = vmul.f32 %v1536, 1.442695
        %v1538 = vpow.pop %v1537
        %v1539 = vsel %vm1128, %v1538, 0.0
        %1540 = vadd.xlane.f32.xlu0 %v1539
        %v1541 = vpop.xlane.xlu0 %1540
        %v1542 = vrcp.pop %v1541
        %v1543 = vmul.f32 %v1538, %v1542
        %1544 = vrot.lane.b32.xlu0 %v1125, 112
        %v1545 = vpop.permute.xlu0 %1544
        %v1548 = vsel %vm1128, %v1543, 0
        %1550 = vmatprep.subr.mxu0 0.0
        %1551 = vmatpush1.msra.mxu0 %v1545
        %1552 = vmatprep.subr.mxu0 0.0
        %1553 = vmatpush1.msra.mxu0 0.0
        %1554 = vmatprep.subr.mxu0 0.0
        %1555 = vmatpush1.msra.mxu0 0.0
        %1556 = vmatprep.subr.mxu0 0.0
        %1557 = vmatpush1.msra.mxu0 0.0
        %1558 = vmatprep.subr.mxu0 0.0
        %1559 = vmatpush1.msra.mxu0 0.0
        %1560 = vmatprep.subr.mxu0 0.0
        %1561 = vmatpush1.msra.mxu0 0.0
        %1562 = vmatprep.subr.mxu0 0.0
        %1563 = vmatpush1.msra.mxu0 0.0
        %1564 = vmatprep.subr.mxu0 0.0
        %1565 = vmatpush1.msra.mxu0 0.0
        %1566 = vmatprep.subr.mxu0 0.0
        %1567 = vmatpush1.msra.mxu0 0.0
        %1568 = vmatprep.subr.mxu0 0.0
        %1569 = vmatpush1.msra.mxu0 0.0
        %1570 = vmatprep.subr.mxu0 0.0
        %1571 = vmatpush1.msra.mxu0 0.0
        %1572 = vmatprep.subr.mxu0 0.0
        %1573 = vmatpush1.msra.mxu0 0.0
        %1574 = vmatprep.subr.mxu0 0.0
        %1575 = vmatpush1.msra.mxu0 0.0
        %1576 = vmatprep.subr.mxu0 0.0
        %1577 = vmatpush1.msra.mxu0 0.0
        %1578 = vmatprep.subr.mxu0 0.0
        %1579 = vmatpush1.msra.mxu0 0.0
        %1580 = vmatprep.subr.mxu0 0.0
        %1581 = vmatpush1.msra.mxu0 0.0
        %1582 = vmatprep.subr.mxu0 0.0
        %1583 = vmatpush1.msra.mxu0 0.0
        %1584 = vmatprep.subr.mxu0 0.0
        %1585 = vmatpush1.msra.mxu0 0.0
        %1586 = vmatprep.subr.mxu0 0.0
        %1587 = vmatpush1.msra.mxu0 0.0
        %1588 = vmatprep.subr.mxu0 0.0
        %1589 = vmatpush1.msra.mxu0 0.0
        %1590 = vmatprep.subr.mxu0 0.0
        %1591 = vmatpush1.msra.mxu0 0.0
        %1592 = vmatprep.subr.mxu0 0.0
        %1593 = vmatpush1.msra.mxu0 0.0
        %1594 = vmatprep.subr.mxu0 0.0
        %1595 = vmatpush1.msra.mxu0 0.0
        %1596 = vmatprep.subr.mxu0 0.0
        %1597 = vmatpush1.msra.mxu0 0.0
        %1598 = vmatprep.subr.mxu0 0.0
        %1599 = vmatpush1.msra.mxu0 0.0
        %1600 = vmatprep.subr.mxu0 0.0
        %1601 = vmatpush1.msra.mxu0 0.0
        %1602 = vmatprep.subr.mxu0 0.0
        %1603 = vmatpush1.msra.mxu0 0.0
        %1604 = vmatprep.subr.mxu0 0.0
        %1605 = vmatpush1.msra.mxu0 0.0
        %1606 = vmatprep.subr.mxu0 0.0
        %1607 = vmatpush1.msra.mxu0 0.0
        %1608 = vmatprep.subr.mxu0 0.0
        %1609 = vmatpush1.msra.mxu0 0.0
        %1610 = vmatprep.subr.mxu0 0.0
        %1611 = vmatpush1.msra.mxu0 0.0
        %1612 = vmatprep.subr.mxu0 0.0
        %1613 = vmatpush1.msra.mxu0 0.0
        %1614 = vmatprep.mubr.f32.mxu0 0.0
        %1615 = vmatmul.mubr.f32.gmra.mrb[0].mxu0 %v1548
        %v1616 = vpop.f32.mrb[0].mxu0
        %v1617 = vadd.f32 0.0, %v1616
        %v1618 = vpop.f32.mrb[0].mxu0
        %1619 = vdwg.mxu0
        %1620 = vrot.lane.b32.xlu0 %v963, 104
        %v1621 = vpop.permute.xlu0 %1620
        %1622 = vrot.lane.b32.xlu0 %v1044, 104
        %v1623 = vpop.permute.xlu0 %1622
        %v1624 = vsel %vm1128, %v1621, 0
        %v1626 = vsel %vm1128, %v1623, 0
        %1628 = vmatprep.subr.mxu0 0.0
        %1629 = vmatpush1.xpose.msra.mxu0 %v1626
        %1630 = vmatprep.subr.mxu0 0.0
        %1631 = vmatpush1.xpose.msra.mxu0 0.0
        %1632 = vmatprep.subr.mxu0 0.0
        %1633 = vmatpush1.xpose.msra.mxu0 0.0
        %1634 = vmatprep.subr.mxu0 0.0
        %1635 = vmatpush1.xpose.msra.mxu0 0.0
        %1636 = vmatprep.subr.mxu0 0.0
        %1637 = vmatpush1.xpose.msra.mxu0 0.0
        %1638 = vmatprep.subr.mxu0 0.0
        %1639 = vmatpush1.xpose.msra.mxu0 0.0
        %1640 = vmatprep.subr.mxu0 0.0
        %1641 = vmatpush1.xpose.msra.mxu0 0.0
        %1642 = vmatprep.subr.mxu0 0.0
        %1643 = vmatpush1.xpose.msra.mxu0 0.0
        %1644 = vmatprep.subr.mxu0 0.0
        %1645 = vmatpush1.xpose.msra.mxu0 0.0
        %1646 = vmatprep.subr.mxu0 0.0
        %1647 = vmatpush1.xpose.msra.mxu0 0.0
        %1648 = vmatprep.subr.mxu0 0.0
        %1649 = vmatpush1.xpose.msra.mxu0 0.0
        %1650 = vmatprep.subr.mxu0 0.0
        %1651 = vmatpush1.xpose.msra.mxu0 0.0
        %1652 = vmatprep.subr.mxu0 0.0
        %1653 = vmatpush1.xpose.msra.mxu0 0.0
        %1654 = vmatprep.subr.mxu0 0.0
        %1655 = vmatpush1.xpose.msra.mxu0 0.0
        %1656 = vmatprep.subr.mxu0 0.0
        %1657 = vmatpush1.xpose.msra.mxu0 0.0
        %1658 = vmatprep.subr.mxu0 0.0
        %1659 = vmatpush1.xpose.msra.mxu0 0.0
        %1660 = vmatprep.subr.mxu0 0.0
        %1661 = vmatpush1.xpose.msra.mxu0 0.0
        %1662 = vmatprep.subr.mxu0 0.0
        %1663 = vmatpush1.xpose.msra.mxu0 0.0
        %1664 = vmatprep.subr.mxu0 0.0
        %1665 = vmatpush1.xpose.msra.mxu0 0.0
        %1666 = vmatprep.subr.mxu0 0.0
        %1667 = vmatpush1.xpose.msra.mxu0 0.0
        %1668 = vmatprep.subr.mxu0 0.0
        %1669 = vmatpush1.xpose.msra.mxu0 0.0
        %1670 = vmatprep.subr.mxu0 0.0
        %1671 = vmatpush1.xpose.msra.mxu0 0.0
        %1672 = vmatprep.subr.mxu0 0.0
        %1673 = vmatpush1.xpose.msra.mxu0 0.0
        %1674 = vmatprep.subr.mxu0 0.0
        %1675 = vmatpush1.xpose.msra.mxu0 0.0
        %1676 = vmatprep.subr.mxu0 0.0
        %1677 = vmatpush1.xpose.msra.mxu0 0.0
        %1678 = vmatprep.subr.mxu0 0.0
        %1679 = vmatpush1.xpose.msra.mxu0 0.0
        %1680 = vmatprep.subr.mxu0 0.0
        %1681 = vmatpush1.xpose.msra.mxu0 0.0
        %1682 = vmatprep.subr.mxu0 0.0
        %1683 = vmatpush1.xpose.msra.mxu0 0.0
        %1684 = vmatprep.subr.mxu0 0.0
        %1685 = vmatpush1.xpose.msra.mxu0 0.0
        %1686 = vmatprep.subr.mxu0 0.0
        %1687 = vmatpush1.xpose.msra.mxu0 0.0
        %1688 = vmatprep.subr.mxu0 0.0
        %1689 = vmatpush1.xpose.msra.mxu0 0.0
        %1690 = vmatprep.subr.mxu0 0.0
        %1691 = vmatpush1.xpose.msra.mxu0 0.0
        %1692 = vmatprep.mubr.f32.mxu0 0.0
        %1693 = vmatmul.mubr.f32.gmra.mrb[0].mxu0 %v1624
        %v1694 = vpop.f32.mrb[0].mxu0
        %v1695 = vadd.f32 0.0, %v1694
        %v1696 = vpop.f32.mrb[0].mxu0
        %1697 = vdwg.mxu0
        %v1698 = vsel %vm1128, %v1695, -inf
        %1699 = vmax.xlane.f32.xlu0 %v1698
        %v1700 = vpop.xlane.xlu0 %1699
        %v1701 = vsub.f32 %v1695, %v1700
        %v1702 = vmul.f32 %v1701, 1.442695
        %v1703 = vpow.pop %v1702
        %v1704 = vsel %vm1128, %v1703, 0.0
        %1705 = vadd.xlane.f32.xlu0 %v1704
        %v1706 = vpop.xlane.xlu0 %1705
        %v1707 = vrcp.pop %v1706
        %v1708 = vmul.f32 %v1703, %v1707
        %1709 = vrot.lane.b32.xlu0 %v1125, 104
        %v1710 = vpop.permute.xlu0 %1709
        %v1713 = vsel %vm1128, %v1708, 0
        %1715 = vmatprep.subr.mxu0 0.0
        %1716 = vmatpush1.msra.mxu0 %v1710
        %1717 = vmatprep.subr.mxu0 0.0
        %1718 = vmatpush1.msra.mxu0 0.0
        %1719 = vmatprep.subr.mxu0 0.0
        %1720 = vmatpush1.msra.mxu0 0.0
        %1721 = vmatprep.subr.mxu0 0.0
        %1722 = vmatpush1.msra.mxu0 0.0
        %1723 = vmatprep.subr.mxu0 0.0
        %1724 = vmatpush1.msra.mxu0 0.0
        %1725 = vmatprep.subr.mxu0 0.0
        %1726 = vmatpush1.msra.mxu0 0.0
        %1727 = vmatprep.subr.mxu0 0.0
        %1728 = vmatpush1.msra.mxu0 0.0
        %1729 = vmatprep.subr.mxu0 0.0
        %1730 = vmatpush1.msra.mxu0 0.0
        %1731 = vmatprep.subr.mxu0 0.0
        %1732 = vmatpush1.msra.mxu0 0.0
        %1733 = vmatprep.subr.mxu0 0.0
        %1734 = vmatpush1.msra.mxu0 0.0
        %1735 = vmatprep.subr.mxu0 0.0
        %1736 = vmatpush1.msra.mxu0 0.0
        %1737 = vmatprep.subr.mxu0 0.0
        %1738 = vmatpush1.msra.mxu0 0.0
        %1739 = vmatprep.subr.mxu0 0.0
        %1740 = vmatpush1.msra.mxu0 0.0
        %1741 = vmatprep.subr.mxu0 0.0
        %1742 = vmatpush1.msra.mxu0 0.0
        %1743 = vmatprep.subr.mxu0 0.0
        %1744 = vmatpush1.msra.mxu0 0.0
        %1745 = vmatprep.subr.mxu0 0.0
        %1746 = vmatpush1.msra.mxu0 0.0
        %1747 = vmatprep.subr.mxu0 0.0
        %1748 = vmatpush1.msra.mxu0 0.0
        %1749 = vmatprep.subr.mxu0 0.0
        %1750 = vmatpush1.msra.mxu0 0.0
        %1751 = vmatprep.subr.mxu0 0.0
        %1752 = vmatpush1.msra.mxu0 0.0
        %1753 = vmatprep.subr.mxu0 0.0
        %1754 = vmatpush1.msra.mxu0 0.0
        %1755 = vmatprep.subr.mxu0 0.0
        %1756 = vmatpush1.msra.mxu0 0.0
        %1757 = vmatprep.subr.mxu0 0.0
        %1758 = vmatpush1.msra.mxu0 0.0
        %1759 = vmatprep.subr.mxu0 0.0
        %1760 = vmatpush1.msra.mxu0 0.0
        %1761 = vmatprep.subr.mxu0 0.0
        %1762 = vmatpush1.msra.mxu0 0.0
        %1763 = vmatprep.subr.mxu0 0.0
        %1764 = vmatpush1.msra.mxu0 0.0
        %1765 = vmatprep.subr.mxu0 0.0
        %1766 = vmatpush1.msra.mxu0 0.0
        %1767 = vmatprep.subr.mxu0 0.0
        %1768 = vmatpush1.msra.mxu0 0.0
        %1769 = vmatprep.subr.mxu0 0.0
        %1770 = vmatpush1.msra.mxu0 0.0
        %1771 = vmatprep.subr.mxu0 0.0
        %1772 = vmatpush1.msra.mxu0 0.0
        %1773 = vmatprep.subr.mxu0 0.0
        %1774 = vmatpush1.msra.mxu0 0.0
        %1775 = vmatprep.subr.mxu0 0.0
        %1776 = vmatpush1.msra.mxu0 0.0
        %1777 = vmatprep.subr.mxu0 0.0
        %1778 = vmatpush1.msra.mxu0 0.0
        %1779 = vmatprep.mubr.f32.mxu0 0.0
        %1780 = vmatmul.mubr.f32.gmra.mrb[0].mxu0 %v1713
        %v1781 = vpop.f32.mrb[0].mxu0
        %v1782 = vadd.f32 0.0, %v1781
        %v1783 = vpop.f32.mrb[0].mxu0
        %1784 = vdwg.mxu0
        %1786 = vrot.lane.b32.xlu0 %v1452, 8
        %v1787 = vpop.permute.xlu0 %1786
        %1790 = vrot.lane.b32.xlu0 %v1617, 16
        %v1791 = vpop.permute.xlu0 %1790
        %1794 = vrot.lane.b32.xlu0 %v1782, 24
        %v1795 = vpop.permute.xlu0 %1794
        %v1797 = vsel %vm1128, %v1286, %v1787
        %vm1798 = vcmask 130048
        %v1799 = vsel %vm1798, %v1797, %v1791
        %vm1800 = vcmask 195584
        %v1801 = vsel %vm1800, %v1799, %v1795
        %v1802 = vld [vmem:[%s703] sm:$0xff]
        %v1803 = vld [vmem:[%s703 + $0x8] sm:$0xff]
        %v1804 = vld [vmem:[%s703 + $0x10] sm:$0xff]
        %v1805 = vld [vmem:[%s703 + $0x18] sm:$0xff]
        %v1806 = vld [vmem:[%s849] sm:$0x1]
        %v1808 = vlaneseq
        %v1809 = vshrl.u32 %v1808, 7
        %v1810 = vsub.s32 0, %v1809
        %v1811 = vrot.slane %v1806, %v1810
        %v1814 = vsel %vm892, %v1801, 0
        %1816 = vmatprep.subr.mxu0 0.0
        %1817 = vmatpush1.msra.mxu0 %v1802
        %1818 = vmatprep.subr.mxu0 0.0
        %1819 = vmatpush1.msra.mxu0 %v1803
        %1820 = vmatprep.subr.mxu0 0.0
        %1821 = vmatpush1.msra.mxu0 %v1804
        %1822 = vmatprep.subr.mxu0 0.0
        %1823 = vmatpush1.msra.mxu0 %v1805
        %1824 = vmatprep.subr.mxu0 0.0
        %1825 = vmatpush1.msra.mxu0 0.0
        %1826 = vmatprep.subr.mxu0 0.0
        %1827 = vmatpush1.msra.mxu0 0.0
        %1828 = vmatprep.subr.mxu0 0.0
        %1829 = vmatpush1.msra.mxu0 0.0
        %1830 = vmatprep.subr.mxu0 0.0
        %1831 = vmatpush1.msra.mxu0 0.0
        %1832 = vmatprep.subr.mxu0 0.0
        %1833 = vmatpush1.msra.mxu0 0.0
        %1834 = vmatprep.subr.mxu0 0.0
        %1835 = vmatpush1.msra.mxu0 0.0
        %1836 = vmatprep.subr.mxu0 0.0
        %1837 = vmatpush1.msra.mxu0 0.0
        %1838 = vmatprep.subr.mxu0 0.0
        %1839 = vmatpush1.msra.mxu0 0.0
        %1840 = vmatprep.subr.mxu0 0.0
        %1841 = vmatpush1.msra.mxu0 0.0
        %1842 = vmatprep.subr.mxu0 0.0
        %1843 = vmatpush1.msra.mxu0 0.0
        %1844 = vmatprep.subr.mxu0 0.0
        %1845 = vmatpush1.msra.mxu0 0.0
        %1846 = vmatprep.subr.mxu0 0.0
        %1847 = vmatpush1.msra.mxu0 0.0
        %1848 = vmatprep.subr.mxu0 0.0
        %1849 = vmatpush1.msra.mxu0 0.0
        %1850 = vmatprep.subr.mxu0 0.0
        %1851 = vmatpush1.msra.mxu0 0.0
        %1852 = vmatprep.subr.mxu0 0.0
        %1853 = vmatpush1.msra.mxu0 0.0
        %1854 = vmatprep.subr.mxu0 0.0
        %1855 = vmatpush1.msra.mxu0 0.0
        %1856 = vmatprep.subr.mxu0 0.0
        %1857 = vmatpush1.msra.mxu0 0.0
        %1858 = vmatprep.subr.mxu0 0.0
        %1859 = vmatpush1.msra.mxu0 0.0
        %1860 = vmatprep.subr.mxu0 0.0
        %1861 = vmatpush1.msra.mxu0 0.0
        %1862 = vmatprep.subr.mxu0 0.0
        %1863 = vmatpush1.msra.mxu0 0.0
        %1864 = vmatprep.subr.mxu0 0.0
        %1865 = vmatpush1.msra.mxu0 0.0
        %1866 = vmatprep.subr.mxu0 0.0
        %1867 = vmatpush1.msra.mxu0 0.0
        %1868 = vmatprep.subr.mxu0 0.0
        %1869 = vmatpush1.msra.mxu0 0.0
        %1870 = vmatprep.subr.mxu0 0.0
        %1871 = vmatpush1.msra.mxu0 0.0
        %1872 = vmatprep.subr.mxu0 0.0
        %1873 = vmatpush1.msra.mxu0 0.0
        %1874 = vmatprep.subr.mxu0 0.0
        %1875 = vmatpush1.msra.mxu0 0.0
        %1876 = vmatprep.subr.mxu0 0.0
        %1877 = vmatpush1.msra.mxu0 0.0
        %1878 = vmatprep.subr.mxu0 0.0
        %1879 = vmatpush1.msra.mxu0 0.0
        %1880 = vmatprep.mubr.f32.mxu0 0.0
        %1881 = vmatmul.mubr.f32.gmra.mrb[0].mxu0 %v1814
        %v1882 = vpop.f32.mrb[0].mxu0
        %v1883 = vadd.f32 %v1811, %v1882
        %v1884 = vpop.f32.mrb[0].mxu0
        %1885 = vdwg.mxu0
        %v1886 = vadd.f32 %v880, %v1883
        %v1887 = vld [vmem:[%s852] sm:$0x1]
        %v1888 = vld [vmem:[%s855] sm:$0x1]
        %v1889 = vsel %vm892, %v1886, 0.0
        %1890 = vadd.xlane.f32.xlu0 %v1889
        %v1891 = vpop.xlane.xlu0 %1890
        %v1892 = vrcp.pop 32.0
        %v1893 = vmul.f32 %v1891, %v1892
        %v1894 = vsub.f32 %v1886, %v1893
        %v1895 = vmul.f32 %v1894, %v1894
        %v1896 = vsel %vm892, %v1895, 0.0
        %1897 = vadd.xlane.f32.xlu0 %v1896
        %v1898 = vpop.xlane.xlu0 %1897
        %v1899 = vmul.f32 %v1898, %v1892
        %v1900 = vadd.f32 %v1899, 1e-05
        %v1901 = vrsqrt.pop %v1900
        %v1902 = vmul.f32 %v1894, %v1901
        %v1904 = vlaneseq
        %v1905 = vshrl.u32 %v1904, 7
        %v1906 = vsub.s32 0, %v1905
        %v1907 = vrot.slane %v1887, %v1906
        %v1909 = vmul.f32 %v1902, %v1907
        %v1911 = vlaneseq
        %v1912 = vshrl.u32 %v1911, 7
        %v1913 = vsub.s32 0, %v1912
        %v1914 = vrot.slane %v1888, %v1913
        %v1916 = vadd.f32 %v1909, %v1914
        %v1917 = vld [vmem:[%s712] sm:$0xff]
        %v1918 = vld [vmem:[%s712 + $0x8] sm:$0xff]
        %v1919 = vld [vmem:[%s712 + $0x10] sm:$0xff]
        %v1920 = vld [vmem:[%s712 + $0x18] sm:$0xff]
        %v1921 = vld [vmem:[%s858] sm:$0x1]
        %v1923 = vlaneseq
        %v1924 = vshrl.u32 %v1923, 7
        %v1925 = vsub.s32 0, %v1924
        %v1926 = vrot.slane %v1921, %v1925
        %v1929 = vsel %vm892, %v1916, 0
        %1931 = vmatprep.subr.mxu0 0.0
        %1932 = vmatpush1.msra.mxu0 %v1917
        %1933 = vmatprep.subr.mxu0 0.0
        %1934 = vmatpush1.msra.mxu0 %v1918
        %1935 = vmatprep.subr.mxu0 0.0
        %1936 = vmatpush1.msra.mxu0 %v1919
        %1937 = vmatprep.subr.mxu0 0.0
        %1938 = vmatpush1.msra.mxu0 %v1920
        %1939 = vmatprep.subr.mxu0 0.0
        %1940 = vmatpush1.msra.mxu0 0.0
        %1941 = vmatprep.subr.mxu0 0.0
        %1942 = vmatpush1.msra.mxu0 0.0
        %1943 = vmatprep.subr.mxu0 0.0
        %1944 = vmatpush1.msra.mxu0 0.0
        %1945 = vmatprep.subr.mxu0 0.0
        %1946 = vmatpush1.msra.mxu0 0.0
        %1947 = vmatprep.subr.mxu0 0.0
        %1948 = vmatpush1.msra.mxu0 0.0
        %1949 = vmatprep.subr.mxu0 0.0
        %1950 = vmatpush1.msra.mxu0 0.0
        %1951 = vmatprep.subr.mxu0 0.0
        %1952 = vmatpush1.msra.mxu0 0.0
        %1953 = vmatprep.subr.mxu0 0.0
        %1954 = vmatpush1.msra.mxu0 0.0
        %1955 = vmatprep.subr.mxu0 0.0
        %1956 = vmatpush1.msra.mxu0 0.0
        %1957 = vmatprep.subr.mxu0 0.0
        %1958 = vmatpush1.msra.mxu0 0.0
        %1959 = vmatprep.subr.mxu0 0.0
        %1960 = vmatpush1.msra.mxu0 0.0
        %1961 = vmatprep.subr.mxu0 0.0
        %1962 = vmatpush1.msra.mxu0 0.0
        %1963 = vmatprep.subr.mxu0 0.0
        %1964 = vmatpush1.msra.mxu0 0.0
        %1965 = vmatprep.subr.mxu0 0.0
        %1966 = vmatpush1.msra.mxu0 0.0
        %1967 = vmatprep.subr.mxu0 0.0
        %1968 = vmatpush1.msra.mxu0 0.0
        %1969 = vmatprep.subr.mxu0 0.0
        %1970 = vmatpush1.msra.mxu0 0.0
        %1971 = vmatprep.subr.mxu0 0.0
        %1972 = vmatpush1.msra.mxu0 0.0
        %1973 = vmatprep.subr.mxu0 0.0
        %1974 = vmatpush1.msra.mxu0 0.0
        %1975 = vmatprep.subr.mxu0 0.0
        %1976 = vmatpush1.msra.mxu0 0.0
        %1977 = vmatprep.subr.mxu0 0.0
        %1978 = vmatpush1.msra.mxu0 0.0
        %1979 = vmatprep.subr.mxu0 0.0
        %1980 = vmatpush1.msra.mxu0 0.0
        %1981 = vmatprep.subr.mxu0 0.0
        %1982 = vmatpush1.msra.mxu0 0.0
        %1983 = vmatprep.subr.mxu0 0.0
        %1984 = vmatpush1.msra.mxu0 0.0
        %1985 = vmatprep.subr.mxu0 0.0
        %1986 = vmatpush1.msra.mxu0 0.0
        %1987 = vmatprep.subr.mxu0 0.0
        %1988 = vmatpush1.msra.mxu0 0.0
        %1989 = vmatprep.subr.mxu0 0.0
        %1990 = vmatpush1.msra.mxu0 0.0
        %1991 = vmatprep.subr.mxu0 0.0
        %1992 = vmatpush1.msra.mxu0 0.0
        %1993 = vmatprep.subr.mxu0 0.0
        %1994 = vmatpush1.msra.mxu0 0.0
        %1995 = vmatprep.mubr.f32.mxu0 0.0
        %1996 = vmatmul.mubr.f32.gmra.mrb[0].mxu0 %v1929
        %v1997 = vpop.f32.mrb[0].mxu0
        %v1998 = vadd.f32 %v1926, %v1997
        %v1999 = vpop.f32.mrb[0].mxu0
        %2000 = vdwg.mxu0
        %v2001 = vmax.f32 %v1998, 0.0
        %v2002 = vld [vmem:[%s863] sm:$0xff]
        %v2003 = vld [vmem:[%s863 + $0x8] sm:$0xff]
        %v2004 = vld [vmem:[%s863 + $0x10] sm:$0xff]
        %v2005 = vld [vmem:[%s863 + $0x18] sm:$0xff]
        %v2006 = vld [vmem:[%s863 + $0x20] sm:$0xff]
        %v2007 = vld [vmem:[%s863 + $0x28] sm:$0xff]
        %v2008 = vld [vmem:[%s863 + $0x30] sm:$0xff]
        %v2009 = vld [vmem:[%s863 + $0x38] sm:$0xff]
        %v2010 = vld [vmem:[%s866] sm:$0x1]
        %v2012 = vlaneseq
        %v2013 = vshrl.u32 %v2012, 7
        %v2014 = vsub.s32 0, %v2013
        %v2015 = vrot.slane %v2010, %v2014
        %vm2017 = vcmask 523264
        %v2019 = vsel %vm2017, %v2001, 0
        %2021 = vmatprep.subr.mxu0 0.0
        %2022 = vmatpush1.msra.mxu0 %v2002
        %2023 = vmatprep.subr.mxu0 0.0
        %2024 = vmatpush1.msra.mxu0 %v2003
        %2025 = vmatprep.subr.mxu0 0.0
        %2026 = vmatpush1.msra.mxu0 %v2004
        %2027 = vmatprep.subr.mxu0 0.0
        %2028 = vmatpush1.msra.mxu0 %v2005
        %2029 = vmatprep.subr.mxu0 0.0
        %2030 = vmatpush1.msra.mxu0 %v2006
        %2031 = vmatprep.subr.mxu0 0.0
        %2032 = vmatpush1.msra.mxu0 %v2007
        %2033 = vmatprep.subr.mxu0 0.0
        %2034 = vmatpush1.msra.mxu0 %v2008
        %2035 = vmatprep.subr.mxu0 0.0
        %2036 = vmatpush1.msra.mxu0 %v2009
        %2037 = vmatprep.subr.mxu0 0.0
        %2038 = vmatpush1.msra.mxu0 0.0
        %2039 = vmatprep.subr.mxu0 0.0
        %2040 = vmatpush1.msra.mxu0 0.0
        %2041 = vmatprep.subr.mxu0 0.0
        %2042 = vmatpush1.msra.mxu0 0.0
        %2043 = vmatprep.subr.mxu0 0.0
        %2044 = vmatpush1.msra.mxu0 0.0
        %2045 = vmatprep.subr.mxu0 0.0
        %2046 = vmatpush1.msra.mxu0 0.0
        %2047 = vmatprep.subr.mxu0 0.0
        %2048 = vmatpush1.msra.mxu0 0.0
        %2049 = vmatprep.subr.mxu0 0.0
        %2050 = vmatpush1.msra.mxu0 0.0
        %2051 = vmatprep.subr.mxu0 0.0
        %2052 = vmatpush1.msra.mxu0 0.0
        %2053 = vmatprep.subr.mxu0 0.0
        %2054 = vmatpush1.msra.mxu0 0.0
        %2055 = vmatprep.subr.mxu0 0.0
        %2056 = vmatpush1.msra.mxu0 0.0
        %2057 = vmatprep.subr.mxu0 0.0
        %2058 = vmatpush1.msra.mxu0 0.0
        %2059 = vmatprep.subr.mxu0 0.0
        %2060 = vmatpush1.msra.mxu0 0.0
        %2061 = vmatprep.subr.mxu0 0.0
        %2062 = vmatpush1.msra.mxu0 0.0
        %2063 = vmatprep.subr.mxu0 0.0
        %2064 = vmatpush1.msra.mxu0 0.0
        %2065 = vmatprep.subr.mxu0 0.0
        %2066 = vmatpush1.msra.mxu0 0.0
        %2067 = vmatprep.subr.mxu0 0.0
        %2068 = vmatpush1.msra.mxu0 0.0
        %2069 = vmatprep.subr.mxu0 0.0
        %2070 = vmatpush1.msra.mxu0 0.0
        %2071 = vmatprep.subr.mxu0 0.0
        %2072 = vmatpush1.msra.mxu0 0.0
        %2073 = vmatprep.subr.mxu0 0.0
        %2074 = vmatpush1.msra.mxu0 0.0
        %2075 = vmatprep.subr.mxu0 0.0
        %2076 = vmatpush1.msra.mxu0 0.0
        %2077 = vmatprep.subr.mxu0 0.0
        %2078 = vmatpush1.msra.mxu0 0.0
        %2079 = vmatprep.subr.mxu0 0.0
        %2080 = vmatpush1.msra.mxu0 0.0
        %2081 = vmatprep.subr.mxu0 0.0
        %2082 = vmatpush1.msra.mxu0 0.0
        %2083 = vmatprep.subr.mxu0 0.0
        %2084 = vmatpush1.msra.mxu0 0.0
        %2085 = vmatprep.mubr.f32.mxu0 0.0
        %2086 = vmatmul.mubr.f32.gmra.mrb[0].mxu0 %v2019
        %v2087 = vpop.f32.mrb[0].mxu0
        %v2088 = vadd.f32 %v2015, %v2087
        %v2089 = vpop.f32.mrb[0].mxu0
        %2090 = vdwg.mxu0
        %v2091 = vadd.f32 %v1916, %v2088
        %v2092 = vld [vmem:[%s869] sm:$0x1]
        %v2093 = vld [vmem:[%s872] sm:$0x1]
        %v2094 = vsel %vm892, %v2091, 0.0
        %2095 = vadd.xlane.f32.xlu0 %v2094
        %v2096 = vpop.xlane.xlu0 %2095
        %v2097 = vmul.f32 %v2096, %v1892
        %v2098 = vsub.f32 %v2091, %v2097
        %v2099 = vmul.f32 %v2098, %v2098
        %v2100 = vsel %vm892, %v2099, 0.0
        %2101 = vadd.xlane.f32.xlu0 %v2100
        %v2102 = vpop.xlane.xlu0 %2101
        %v2103 = vmul.f32 %v2102, %v1892
        %v2104 = vadd.f32 %v2103, 1e-05
        %v2105 = vrsqrt.pop %v2104
        %v2106 = vmul.f32 %v2098, %v2105
        %v2108 = vlaneseq
        %v2109 = vshrl.u32 %v2108, 7
        %v2110 = vsub.s32 0, %v2109
        %v2111 = vrot.slane %v2092, %v2110
        %v2113 = vmul.f32 %v2106, %v2111
        %v2115 = vlaneseq
        %v2116 = vshrl.u32 %v2115, 7
        %v2117 = vsub.s32 0, %v2116
        %v2118 = vrot.slane %v2093, %v2117
        %v2120 = vadd.f32 %v2113, %v2118
        %2121 = vst.msk [vmem:[%s822] sm:$0xff] %vm892, %v2120
        %s2122 = sand.u32 %s499, 1
        %s2123 = scalar_lea.sflag [#allocation4], %s2122
        %s2124 = sand.u32 %s499, 1
        %s2125 = smul.addr %s2124, 8
        %s2126 = scalar_lea.vmem [#allocation8], %s2125
        // Predicated region
        $region105: #{tpu_custom_call.1} parent=87 // pred_check
          %p2127 = pneg %p509
        $region106: #{tpu_custom_call.1} parent=87 // pred_check_branch
          %2129 = sbr.rel (%p2127) target = $region108
        $region107: #{tpu_custom_call.1} parent=87 // pred_region
          %s2131 = ssub.s32 128, 128
          %2132 = vsyncadd %s2123, %s2131
          %s2133 = smul.addr %s41, 128
          %s2134 = scalar_lea.hbm %s17, %s2133
          %s2136 = sshll.u32 %s2126, 4
          %s2137 = int_to_ptr.vmem [resolvable:$true] %s2136
          %2139 = dma.vmem_to_hbm [thread:$0]  %s2137, 128, %s2134, %s2123
        $region108: #{tpu_custom_call.1} parent=87 // pred_fallthru
          _
      $region88: #{tpu_custom_call.1} parent=5 // pred_fallthru
        _
      %p2140 = scmp.le.s32.totalorder 2, %s32
      // Predicated region
      $region109: #{tpu_custom_call.1} parent=5 // pred_check
        %p2141 = pneg %p2140
      $region110: #{tpu_custom_call.1} parent=5 // pred_check_branch
        %2143 = sbr.rel (%p2141) target = $region112
      $region111: #{tpu_custom_call.1} parent=5 // pred_region
        %s2144 = ssub.s32 %s32, 2
        // Predicated region
        $region113: #{tpu_custom_call.1} parent=111 // pred_check
          %p2145 = pneg %p515
        $region114: #{tpu_custom_call.1} parent=111 // pred_check_branch
          %2147 = sbr.rel (%p2145) target = $region116
        $region115: #{tpu_custom_call.1} parent=111 // pred_region
          %s2148 = sand.u32 %s500, 1
          %s2149 = scalar_lea.sflag [#allocation4], %s2148
          %s2150 = sand.u32 %s500, 1
          %s2151 = smul.addr %s2150, 8
          %s2152 = scalar_lea.vmem [#allocation8], %s2151
          %2153 = dma.done %s2149, 128
        $region116: #{tpu_custom_call.1} parent=111 // pred_fallthru
          _
      $region112: #{tpu_custom_call.1} parent=5 // pred_fallthru
        _
    $region6: #{tpu_custom_call.1} parent=1 // loop_footer
      %s36 = sadd.s32 1, %s32
    $region7: #{tpu_custom_call.1} parent=1 // loop_footer_branch
      %31 = sbr.rel target = $region3
    $region8: #{tpu_custom_call.1} parent=1 // loop_exit
      _
    %2154 = vsyncpa [#allocation3], 1
    %s2155 = scalar_lea.sflag [#allocation3], 1
    %2156 = vsyncpa %s2155, 1
    %2157 = vsyncpa [#allocation6], 1
    %s2158 = scalar_lea.sflag [#allocation6], 1
    %2159 = vsyncpa %s2158, 1
    %2160 = vsyncpa [#allocation4], 1
    %s2161 = scalar_lea.sflag [#allocation4], 1
    %2162 = vsyncpa %s2161, 1

</llo_original>
